<compile_context>
chip_gen: v6e
topology: v6e:2x2x1
jax: 0.10.0
libtpu: 0.0.40
codegen_flags: <defaults>
</compile_context>

<pallas_src>
import math

import jax
import jax.numpy as jnp
from jax import lax
from jax.experimental import pallas as pl
from jax.experimental.pallas import tpu as pltpu

# ---------------- model config (small, consistent with the module) -----------
DIM = 64
N_HEADS = 4
HEAD_DIM = DIM // N_HEADS
MULTIPLE_OF = 32
NORM_EPS = 1e-5
SEQ = 8
BATCH = 2


def _ffn_hidden_dim(dim: int, multiple_of: int) -> int:
    hidden = 4 * dim
    hidden = int(2 * hidden / 3)
    return multiple_of * ((hidden + multiple_of - 1) // multiple_of)


HIDDEN = _ffn_hidden_dim(DIM, MULTIPLE_OF)  # 192 for dim=64, multiple_of=32


# ---------------- Pallas kernel ----------------------------------------------
def _transformer_block_kernel(
    x_ref,      # (BS, D)   f32  flattened activations (BS = B*S)
    wqkv_ref,   # (D, 5D)   bf16 [g1*Wq*s | g1*Wq*s@R | g1*Wk | g1*Wk@R | g1*Wv]
    tab_ref,    # (BS, 4D+BS) f32 [cos | sin | cos | sin | additive mask]
    wo_ref,     # (D, D)    bf16 output projection
    w13_ref,    # (D, 2H)   bf16 [g2*W1 | g2*W3]
    w2_ref,     # (H, D)    bf16
    out_ref,    # (BS, D)   f32
):
    x = x_ref[...]                                   # (BS, D), f32
    BS, D = x.shape
    H = w2_ref.shape[0]

    # ---- attention_norm (RMSNorm; elementwise weight folded into wqkv) ----
    inv_rms = lax.rsqrt(jnp.mean(x * x, axis=-1, keepdims=True) + NORM_EPS)
    h = (x * inv_rms).astype(jnp.bfloat16)

    # ---- fused [Q | rot(Q) | K | rot(K) | V] projection (one bf16 MXU push) ----
    qkv = jnp.dot(h, wqkv_ref[...], preferred_element_type=jnp.float32)   # (BS, 5D)
    rope = tab_ref[:, :4 * D]                        # (BS, 4D) cos/sin tables
    terms = qkv[:, :4 * D] * rope                    # VPU mul (f32)
    q = terms[:, 0 * D:1 * D] + terms[:, 1 * D:2 * D]   # RoPE(q) * 1/sqrt(Dh)
    k = terms[:, 2 * D:3 * D] + terms[:, 3 * D:4 * D]   # RoPE(k)
    v = qkv[:, 4 * D:5 * D]

    # ---- head-major tensors (Hn, BS, Dh), bf16 for the MXU ----
    qh = jnp.transpose(q.reshape(BS, N_HEADS, HEAD_DIM), (1, 0, 2)).astype(jnp.bfloat16)
    kh = jnp.transpose(k.reshape(BS, N_HEADS, HEAD_DIM), (1, 0, 2)).astype(jnp.bfloat16)
    vh = jnp.transpose(v.reshape(BS, N_HEADS, HEAD_DIM), (1, 0, 2)).astype(jnp.bfloat16)

    # ---- batched (per-head) causal attention ----
    scores = jnp.einsum("hqd,hkd->hqk", qh, kh,
                        preferred_element_type=jnp.float32)               # (Hn,BS,BS)
    mask = tab_ref[:, 4 * D:]                        # (BS, BS) additive mask
    scores = scores + mask[None, :, :]
    scores = scores - jnp.max(scores, axis=-1, keepdims=True)
    probs = jnp.exp(scores)
    probs = probs * pl.reciprocal(jnp.sum(probs, axis=-1, keepdims=True),
                                  approx=True)

    o = jnp.einsum("hqk,hkd->hqd", probs.astype(jnp.bfloat16), vh,
                   preferred_element_type=jnp.float32)                    # (Hn,BS,Dh)
    # collapse heads back to (BS, D) and do ONE K=64 output projection
    o2 = jnp.transpose(o, (1, 0, 2)).reshape(BS, D).astype(jnp.bfloat16)
    attn = jnp.dot(o2, wo_ref[...], preferred_element_type=jnp.float32)   # (BS, D)

    x_res = x + attn                                                      # residual 1

    # ---- ffn_norm (RMSNorm; elementwise weight folded into w13) ----
    inv_rms2 = lax.rsqrt(jnp.mean(x_res * x_res, axis=-1, keepdims=True) + NORM_EPS)
    h2 = (x_res * inv_rms2).astype(jnp.bfloat16)

    # ---- SwiGLU feed-forward (fused w1|w3 -> one 384-wide push) ----
    gu = jnp.dot(h2, w13_ref[...], preferred_element_type=jnp.float32)    # (BS, 2H)
    g = gu[:, :H]
    u = gu[:, H:]
    silu_g = g * pl.reciprocal(1.0 + jnp.exp(-g), approx=True)
    ff = jnp.dot((silu_g * u).astype(jnp.bfloat16), w2_ref[...],
                 preferred_element_type=jnp.float32)                      # (BS, D)

    out_ref[...] = (x_res + ff).astype(out_ref.dtype)                     # residual 2


# ---------------- wrapper ------------------------------------------------------
def _rotate_half_matrix(n_heads: int, head_dim: int):
    """R such that (x @ R) == rotate_half(x) per head (block-diagonal, with signs)."""
    half = head_dim // 2
    eye = jnp.eye(half, dtype=jnp.float32)
    zero = jnp.zeros((half, half), dtype=jnp.float32)
    r_head = jnp.block([[zero, eye], [-eye, zero]])            # (Dh, Dh)
    return jnp.kron(jnp.eye(n_heads, dtype=jnp.float32), r_head)


def _full_spec(shape):
    n = len(shape)
    return pl.BlockSpec(shape, lambda i: (0,) * n)


@jax.jit
def transformer_block(x, wq, wk, wv, wo, w1, w2, w3, attn_nw, ffn_nw, cos, sin):
    B, S, D = x.shape
    H = w1.shape[1]
    BS = B * S
    Hn, Dh = N_HEADS, HEAD_DIM

    # ---- pack weights / tables (cheap XLA ops, outside the kernel) ----
    scale = 1.0 / math.sqrt(Dh)
    R = _rotate_half_matrix(Hn, Dh)

    # fold attention-norm weight (rows) and the 1/sqrt(Dh) scale into the fused QKV
    wq_s = (attn_nw[:, None] * wq) * scale
    wk_g = attn_nw[:, None] * wk
    wv_g = attn_nw[:, None] * wv
    wqkv = jnp.concatenate([wq_s, wq_s @ R, wk_g, wk_g @ R, wv_g],
                           axis=1).astype(jnp.bfloat16)                    # (D, 5D)

    # fold ffn-norm weight into fused [w1 | w3]
    w13 = jnp.concatenate([ffn_nw[:, None] * w1, ffn_nw[:, None] * w3],
                          axis=1).astype(jnp.bfloat16)                     # (D, 2H)
    w2b = w2.astype(jnp.bfloat16)                                          # (H, D)
    wob = wo.astype(jnp.bfloat16)                                          # (D, D)

    # RoPE tables broadcast to the flattened (B*S, D) layout, head-major columns
    cos_f = jnp.tile(cos, (B, Hn))                                         # (BS, D)
    sin_f = jnp.tile(sin, (B, Hn))                                         # (BS, D)

    # block-diagonal causal additive mask for the flattened (B*S) sequence
    # TODO(synk): for large S generate this in-kernel (broadcasted_iota) and tile
    # the q dimension instead of DMAing a dense (BS, BS) mask.
    idx = jnp.arange(BS)
    same_batch = (idx[:, None] // S) == (idx[None, :] // S)
    causal = idx[None, :] <= idx[:, None]
    mask = jnp.where(same_batch & causal, 0.0, -1e30).astype(jnp.float32)  # (BS, BS)

    # single constant slab: [cos | sin | cos | sin | mask]  -> one DMA descriptor
    tab = jnp.concatenate([cos_f, sin_f, cos_f, sin_f, mask], axis=1)      # (BS, 4D+BS)

    x2d = x.reshape(BS, D)

    out2d = pl.pallas_call(
        _transformer_block_kernel,
        out_shape=jax.ShapeDtypeStruct((BS, D), x.dtype),
        grid=(1,),                                   # single step: one weight push
        in_specs=[
            _full_spec((BS, D)),                     # x (flattened)
            _full_spec((D, 5 * D)),                  # fused qkv(+rot) weights, bf16
            _full_spec((BS, 4 * D + BS)),            # rope tables + mask slab
            _full_spec((D, D)),                      # out projection, bf16
            _full_spec((D, 2 * H)),                  # fused w1|w3, bf16
            _full_spec((H, D)),                      # w2, bf16
        ],
        out_specs=_full_spec((BS, D)),
        input_output_aliases={0: 0},                 # output reuses the x2d buffer
        compiler_params=pltpu.CompilerParams(dimension_semantics=("arbitrary",)),
    )(x2d, wqkv, tab, wob, w13, w2b)

    return out2d.reshape(B, S, D)


# ---------------- pure-JAX reference (for correctness check) ------------------
def _reference(x, wq, wk, wv, wo, w1, w2, w3, attn_nw, ffn_nw, cos, sin):
    def rmsnorm(t, w):
        inv = lax.rsqrt(jnp.mean(t * t, axis=-1, keepdims=True) + NORM_EPS)
        return t * inv * w

    def rope(t):  # (B, S, Hn, Dh)
        t1 = t[..., :HEAD_DIM // 2]
        t2 = t[..., HEAD_DIM // 2:]
        rot = jnp.concatenate([-t2, t1], axis=-1)
        return t * cos[None, :, None, :] + rot * sin[None, :, None, :]

    B, S, D = x.shape
    h = rmsnorm(x, attn_nw)
    q = rope((h @ wq).reshape(B, S, N_HEADS, HEAD_DIM))
    k = rope((h @ wk).reshape(B, S, N_HEADS, HEAD_DIM))
    v = (h @ wv).reshape(B, S, N_HEADS, HEAD_DIM)
    scores = jnp.einsum("bqhd,bkhd->bhqk", q, k) / math.sqrt(HEAD_DIM)
    causal = jnp.tril(jnp.ones((S, S), dtype=bool))
    scores = jnp.where(causal[None, None], scores, -jnp.inf)
    probs = jax.nn.softmax(scores, axis=-1)
    attn = jnp.einsum("bhqk,bkhd->bqhd", probs, v).reshape(B, S, D)
    x_res = x + attn @ wo
    h2 = rmsnorm(x_res, ffn_nw)
    ff = (jax.nn.silu(h2 @ w1) * (h2 @ w3)) @ w2
    return x_res + ff


# ---------------- main ---------------------------------------------------------
if __name__ == "__main__":
    key = jax.random.PRNGKey(0)
    keys = jax.random.split(key, 8)

    x = jax.random.normal(keys[0], (BATCH, SEQ, DIM), dtype=jnp.float32)

    init = lambda k, shape: (0.02 * jax.random.normal(k, shape)).astype(jnp.float32)
    wq = init(keys[1], (DIM, DIM))       # (in, out) — transposed vs torch Linear
    wk = init(keys[2], (DIM, DIM))
    wv = init(keys[3], (DIM, DIM))
    wo = init(keys[4], (DIM, DIM))
    w1 = init(keys[5], (DIM, HIDDEN))
    w2 = init(keys[6], (HIDDEN, DIM))
    w3 = init(keys[7], (DIM, HIDDEN))
    attn_nw = jnp.ones((DIM,), dtype=jnp.float32)   # RMSNorm weights init to 1
    ffn_nw = jnp.ones((DIM,), dtype=jnp.float32)

    # Rotary embedding tables (LLaMA rotate-half convention).
    inv_freq = 1.0 / (10000.0 ** (jnp.arange(0, HEAD_DIM, 2, dtype=jnp.float32) / HEAD_DIM))
    t = jnp.arange(SEQ, dtype=jnp.float32)
    freqs = jnp.outer(t, inv_freq)                      # (S, HEAD_DIM//2)
    emb = jnp.concatenate([freqs, freqs], axis=-1)      # (S, HEAD_DIM)
    cos = jnp.cos(emb)
    sin = jnp.sin(emb)

    out = transformer_block(x, wq, wk, wv, wo, w1, w2, w3, attn_nw, ffn_nw, cos, sin)
    out = jax.block_until_ready(out)

    ref = _reference(x, wq, wk, wv, wo, w1, w2, w3, attn_nw, ffn_nw, cos, sin)
    assert out.shape == (BATCH, SEQ, DIM)
    assert bool(jnp.all(jnp.isfinite(out)))
    # tolerance leaves headroom for bf16 MXU operands + EUP approx-reciprocal paths
    assert bool(jnp.allclose(out, ref, atol=2e-2, rtol=2e-2)), "mismatch vs reference"

    print("KERNEL_OK")
</pallas_src>

<mosaic_0001>
module attributes {stable_mosaic.version = 11 : i64} {
  func.func @_transformer_block_kernel(%arg0: i32, %arg1: memref<16x64xf32, #tpu.memory_space<vmem>>, %arg2: memref<64x320xbf16, #tpu.memory_space<vmem>>, %arg3: memref<16x272xf32, #tpu.memory_space<vmem>>, %arg4: memref<64x64xbf16, #tpu.memory_space<vmem>>, %arg5: memref<64x384xbf16, #tpu.memory_space<vmem>>, %arg6: memref<192x64xbf16, #tpu.memory_space<vmem>>, %arg7: memref<16x64xf32, #tpu.memory_space<vmem>>) attributes {dimension_semantics = [#tpu.dimension_semantics<arbitrary>], iteration_bounds = array<i64: 1>, scalar_prefetch = 0 : i64, scratch_operands = 0 : i64, tpu.core_type = #tpu.core_type<tc>, window_params = [{pipeline_mode = #tpu.pipeline_mode<synchronous>, transform_indices = @transform_0, window_bounds = array<i64: 16, 64>}, {pipeline_mode = #tpu.pipeline_mode<synchronous>, transform_indices = @transform_1, window_bounds = array<i64: 64, 320>}, {pipeline_mode = #tpu.pipeline_mode<synchronous>, transform_indices = @transform_2, window_bounds = array<i64: 16, 272>}, {pipeline_mode = #tpu.pipeline_mode<synchronous>, transform_indices = @transform_3, window_bounds = array<i64: 64, 64>}, {pipeline_mode = #tpu.pipeline_mode<synchronous>, transform_indices = @transform_4, window_bounds = array<i64: 64, 384>}, {pipeline_mode = #tpu.pipeline_mode<synchronous>, transform_indices = @transform_5, window_bounds = array<i64: 192, 64>}, {pipeline_mode = #tpu.pipeline_mode<synchronous>, transform_indices = @transform_6, window_bounds = array<i64: 16, 64>}]} {
    %c0 = arith.constant 0 : index
    %c0_0 = arith.constant 0 : index
    %0 = vector.load %arg1[%c0, %c0_0] : memref<16x64xf32, #tpu.memory_space<vmem>>, vector<16x64xf32>
    %1 = arith.mulf %0, %0 : vector<16x64xf32>
    %cst = arith.constant dense<0.000000e+00> : vector<16xf32>
    %2 = vector.multi_reduction <add>, %1, %cst [1] : vector<16x64xf32> to vector<16xf32>
    %3 = vector.shape_cast %2 : vector<16xf32> to vector<16x1xf32>
    %cst_1 = arith.constant 6.400000e+01 : f32
    %4 = vector.broadcast %cst_1 : f32 to vector<16x1xf32>
    %5 = arith.divf %3, %4 : vector<16x1xf32>
    %cst_2 = arith.constant 9.99999974E-6 : f32
    %6 = vector.broadcast %cst_2 : f32 to vector<16x1xf32>
    %7 = arith.addf %5, %6 : vector<16x1xf32>
    %8 = math.rsqrt %7 : vector<16x1xf32>
    %9 = vector.broadcast %8 : vector<16x1xf32> to vector<16x64xf32>
    %10 = arith.mulf %0, %9 : vector<16x64xf32>
    %11 = arith.truncf %10 : vector<16x64xf32> to vector<16x64xbf16>
    %c0_3 = arith.constant 0 : index
    %c0_4 = arith.constant 0 : index
    %12 = vector.load %arg2[%c0_3, %c0_4] : memref<64x320xbf16, #tpu.memory_space<vmem>>, vector<64x320xbf16>
    %cst_5 = arith.constant dense<0.000000e+00> : vector<16x320xf32>
    %13 = tpu.matmul %11, %12, %cst_5 {dimension_numbers = #tpu.dot_dimension_numbers<[1], [0], [0], [1], [0, 0, 1, 1], [], []>} : vector<16x64xbf16>, vector<64x320xbf16>, vector<16x320xf32> -> vector<16x320xf32>
    %c0_6 = arith.constant 0 : index
    %c0_7 = arith.constant 0 : index
    %14 = vector.load %arg3[%c0_6, %c0_7] : memref<16x272xf32, #tpu.memory_space<vmem>>, vector<16x256xf32>
    %15 = vector.extract_strided_slice %13 {offsets = [0, 0], sizes = [16, 256], strides = [1, 1]} : vector<16x320xf32> to vector<16x256xf32>
    %16 = arith.mulf %15, %14 : vector<16x256xf32>
    %17 = vector.extract_strided_slice %16 {offsets = [0, 0], sizes = [16, 64], strides = [1, 1]} : vector<16x256xf32> to vector<16x64xf32>
    %18 = vector.extract_strided_slice %16 {offsets = [0, 64], sizes = [16, 64], strides = [1, 1]} : vector<16x256xf32> to vector<16x64xf32>
    %19 = arith.addf %17, %18 : vector<16x64xf32>
    %20 = vector.extract_strided_slice %16 {offsets = [0, 128], sizes = [16, 64], strides = [1, 1]} : vector<16x256xf32> to vector<16x64xf32>
    %21 = vector.extract_strided_slice %16 {offsets = [0, 192], sizes = [16, 64], strides = [1, 1]} : vector<16x256xf32> to vector<16x64xf32>
    %22 = arith.addf %20, %21 : vector<16x64xf32>
    %23 = vector.extract_strided_slice %13 {offsets = [0, 256], sizes = [16, 64], strides = [1, 1]} : vector<16x320xf32> to vector<16x64xf32>
    %24 = vector.shape_cast %19 : vector<16x64xf32> to vector<16x4x16xf32>
    %25 = tpu.transpose %24, [1, 0, 2] : vector<16x4x16xf32> -> vector<4x16x16xf32>
    %26 = arith.truncf %25 : vector<4x16x16xf32> to vector<4x16x16xbf16>
    %27 = vector.shape_cast %22 : vector<16x64xf32> to vector<16x4x16xf32>
    %28 = tpu.transpose %27, [1, 0, 2] : vector<16x4x16xf32> -> vector<4x16x16xf32>
    %29 = arith.truncf %28 : vector<4x16x16xf32> to vector<4x16x16xbf16>
    %30 = vector.shape_cast %23 : vector<16x64xf32> to vector<16x4x16xf32>
    %31 = tpu.transpose %30, [1, 0, 2] : vector<16x4x16xf32> -> vector<4x16x16xf32>
    %32 = arith.truncf %31 : vector<4x16x16xf32> to vector<4x16x16xbf16>
    "tpu.trace_start"() <{level = 10 : i32, message = "hqd,hkd->hqk"}> : () -> ()
    %cst_8 = arith.constant dense<0.000000e+00> : vector<4x16x16xf32>
    %33 = tpu.matmul %26, %29, %cst_8 {dimension_numbers = #tpu.dot_dimension_numbers<[2], [2], [1], [1], [0, 0, 0, 1, 1, 1], [0], [0]>} : vector<4x16x16xbf16>, vector<4x16x16xbf16>, vector<4x16x16xf32> -> vector<4x16x16xf32>
    "tpu.trace_stop"() : () -> ()
    %c0_9 = arith.constant 0 : index
    %c256 = arith.constant 256 : index
    %34 = vector.load %arg3[%c0_9, %c256] : memref<16x272xf32, #tpu.memory_space<vmem>>, vector<16x16xf32>
    %35 = vector.shape_cast %34 : vector<16x16xf32> to vector<1x16x16xf32>
    %36 = vector.broadcast %35 : vector<1x16x16xf32> to vector<4x16x16xf32>
    %37 = arith.addf %33, %36 : vector<4x16x16xf32>
    %cst_10 = arith.constant dense<0xFF800000> : vector<4x16xf32>
    %38 = vector.multi_reduction <maximumf>, %37, %cst_10 [2] : vector<4x16x16xf32> to vector<4x16xf32>
    %39 = vector.shape_cast %38 : vector<4x16xf32> to vector<4x16x1xf32>
    %40 = vector.broadcast %39 : vector<4x16x1xf32> to vector<4x16x16xf32>
    %41 = arith.subf %37, %40 : vector<4x16x16xf32>
    %42 = math.exp %41 : vector<4x16x16xf32>
    %cst_11 = arith.constant dense<0.000000e+00> : vector<4x16xf32>
    %43 = vector.multi_reduction <add>, %42, %cst_11 [2] : vector<4x16x16xf32> to vector<4x16xf32>
    %44 = vector.shape_cast %43 : vector<4x16xf32> to vector<4x16x1xf32>
    %45 = tpu.reciprocal %44 {approx = true} : vector<4x16x1xf32> -> vector<4x16x1xf32>
    %46 = vector.broadcast %45 : vector<4x16x1xf32> to vector<4x16x16xf32>
    %47 = arith.mulf %42, %46 : vector<4x16x16xf32>
    %48 = arith.truncf %47 : vector<4x16x16xf32> to vector<4x16x16xbf16>
    "tpu.trace_start"() <{level = 10 : i32, message = "hqk,hkd->hqd"}> : () -> ()
    %cst_12 = arith.constant dense<0.000000e+00> : vector<4x16x16xf32>
    %49 = tpu.matmul %48, %32, %cst_12 {dimension_numbers = #tpu.dot_dimension_numbers<[2], [1], [1], [2], [0, 0, 0, 1, 1, 2], [0], [0]>} : vector<4x16x16xbf16>, vector<4x16x16xbf16>, vector<4x16x16xf32> -> vector<4x16x16xf32>
    "tpu.trace_stop"() : () -> ()
    %50 = tpu.transpose %49, [1, 0, 2] : vector<4x16x16xf32> -> vector<16x4x16xf32>
    %51 = vector.shape_cast %50 : vector<16x4x16xf32> to vector<16x64xf32>
    %52 = arith.truncf %51 : vector<16x64xf32> to vector<16x64xbf16>
    %c0_13 = arith.constant 0 : index
    %c0_14 = arith.constant 0 : index
    %53 = vector.load %arg4[%c0_13, %c0_14] : memref<64x64xbf16, #tpu.memory_space<vmem>>, vector<64x64xbf16>
    %cst_15 = arith.constant dense<0.000000e+00> : vector<16x64xf32>
    %54 = tpu.matmul %52, %53, %cst_15 {dimension_numbers = #tpu.dot_dimension_numbers<[1], [0], [0], [1], [0, 0, 1, 1], [], []>} : vector<16x64xbf16>, vector<64x64xbf16>, vector<16x64xf32> -> vector<16x64xf32>
    %55 = arith.addf %0, %54 : vector<16x64xf32>
    %56 = arith.mulf %55, %55 : vector<16x64xf32>
    %cst_16 = arith.constant dense<0.000000e+00> : vector<16xf32>
    %57 = vector.multi_reduction <add>, %56, %cst_16 [1] : vector<16x64xf32> to vector<16xf32>
    %58 = vector.shape_cast %57 : vector<16xf32> to vector<16x1xf32>
    %cst_17 = arith.constant 6.400000e+01 : f32
    %59 = vector.broadcast %cst_17 : f32 to vector<16x1xf32>
    %60 = arith.divf %58, %59 : vector<16x1xf32>
    %cst_18 = arith.constant 9.99999974E-6 : f32
    %61 = vector.broadcast %cst_18 : f32 to vector<16x1xf32>
    %62 = arith.addf %60, %61 : vector<16x1xf32>
    %63 = math.rsqrt %62 : vector<16x1xf32>
    %64 = vector.broadcast %63 : vector<16x1xf32> to vector<16x64xf32>
    %65 = arith.mulf %55, %64 : vector<16x64xf32>
    %66 = arith.truncf %65 : vector<16x64xf32> to vector<16x64xbf16>
    %c0_19 = arith.constant 0 : index
    %c0_20 = arith.constant 0 : index
    %67 = vector.load %arg5[%c0_19, %c0_20] : memref<64x384xbf16, #tpu.memory_space<vmem>>, vector<64x384xbf16>
    %cst_21 = arith.constant dense<0.000000e+00> : vector<16x384xf32>
    %68 = tpu.matmul %66, %67, %cst_21 {dimension_numbers = #tpu.dot_dimension_numbers<[1], [0], [0], [1], [0, 0, 1, 1], [], []>} : vector<16x64xbf16>, vector<64x384xbf16>, vector<16x384xf32> -> vector<16x384xf32>
    %69 = vector.extract_strided_slice %68 {offsets = [0, 0], sizes = [16, 192], strides = [1, 1]} : vector<16x384xf32> to vector<16x192xf32>
    %70 = vector.extract_strided_slice %68 {offsets = [0, 192], sizes = [16, 192], strides = [1, 1]} : vector<16x384xf32> to vector<16x192xf32>
    %cst_22 = arith.constant 0.000000e+00 : f32
    %71 = vector.broadcast %cst_22 : f32 to vector<16x192xf32>
    %72 = arith.subf %71, %69 : vector<16x192xf32>
    %73 = math.exp %72 : vector<16x192xf32>
    %cst_23 = arith.constant 1.000000e+00 : f32
    %74 = vector.broadcast %cst_23 : f32 to vector<16x192xf32>
    %75 = arith.addf %74, %73 : vector<16x192xf32>
    %76 = tpu.reciprocal %75 {approx = true} : vector<16x192xf32> -> vector<16x192xf32>
    %77 = arith.mulf %69, %76 : vector<16x192xf32>
    %78 = arith.mulf %77, %70 : vector<16x192xf32>
    %79 = arith.truncf %78 : vector<16x192xf32> to vector<16x192xbf16>
    %c0_24 = arith.constant 0 : index
    %c0_25 = arith.constant 0 : index
    %80 = vector.load %arg6[%c0_24, %c0_25] : memref<192x64xbf16, #tpu.memory_space<vmem>>, vector<192x64xbf16>
    %cst_26 = arith.constant dense<0.000000e+00> : vector<16x64xf32>
    %81 = tpu.matmul %79, %80, %cst_26 {dimension_numbers = #tpu.dot_dimension_numbers<[1], [0], [0], [1], [0, 0, 1, 1], [], []>} : vector<16x192xbf16>, vector<192x64xbf16>, vector<16x64xf32> -> vector<16x64xf32>
    %82 = arith.addf %55, %81 : vector<16x64xf32>
    %c0_27 = arith.constant 0 : index
    %c0_28 = arith.constant 0 : index
    %83 = vector.load %arg7[%c0_27, %c0_28] : memref<16x64xf32, #tpu.memory_space<vmem>>, vector<16x64xf32>
    tpu.vector_store %arg7[%c0_27, %c0_28], %82 {strides = array<i32>} : memref<16x64xf32, #tpu.memory_space<vmem>>, vector<16x64xf32>,
    return
  }
  func.func @transform_0(%arg0: i32) -> (i32, i32) {
    %c0_i32 = arith.constant 0 : i32
    %c0_i32_0 = arith.constant 0 : i32
    %c0_i32_1 = arith.constant 0 : i32
    return %c0_i32, %c0_i32_0 : i32, i32
  }
  func.func @transform_1(%arg0: i32) -> (i32, i32) {
    %c0_i32 = arith.constant 0 : i32
    %c0_i32_0 = arith.constant 0 : i32
    %c0_i32_1 = arith.constant 0 : i32
    return %c0_i32, %c0_i32_0 : i32, i32
  }
  func.func @transform_2(%arg0: i32) -> (i32, i32) {
    %c0_i32 = arith.constant 0 : i32
    %c0_i32_0 = arith.constant 0 : i32
    %c0_i32_1 = arith.constant 0 : i32
    return %c0_i32, %c0_i32_0 : i32, i32
  }
  func.func @transform_3(%arg0: i32) -> (i32, i32) {
    %c0_i32 = arith.constant 0 : i32
    %c0_i32_0 = arith.constant 0 : i32
    %c0_i32_1 = arith.constant 0 : i32
    return %c0_i32, %c0_i32_0 : i32, i32
  }
  func.func @transform_4(%arg0: i32) -> (i32, i32) {
    %c0_i32 = arith.constant 0 : i32
    %c0_i32_0 = arith.constant 0 : i32
    %c0_i32_1 = arith.constant 0 : i32
    return %c0_i32, %c0_i32_0 : i32, i32
  }
  func.func @transform_5(%arg0: i32) -> (i32, i32) {
    %c0_i32 = arith.constant 0 : i32
    %c0_i32_0 = arith.constant 0 : i32
    %c0_i32_1 = arith.constant 0 : i32
    return %c0_i32, %c0_i32_0 : i32, i32
  }
  func.func @transform_6(%arg0: i32) -> (i32, i32) {
    %c0_i32 = arith.constant 0 : i32
    %c0_i32_0 = arith.constant 0 : i32
    %c0_i32_1 = arith.constant 0 : i32
    return %c0_i32, %c0_i32_0 : i32, i32
  }
}

</mosaic_0001>

<llo_original>
// kernel: tile.13
$region0: #{tile.13}
  #allocation0 [shape = 's32[1]{0}', space=sflag, size = 0x4, scoped, tag = 'scoped memory for tile.13']
  %s0 = inlined_call_operand.vmem [shape: f32[8,16], index: 0, kind: input, shape index: {}]
  %s1 = inlined_call_operand.vmem [shape: f32[2,8,4,16], index: 1, kind: output, shape index: {}]
  // Predicated region
  $region2: #{tile.13} parent=0 // pred_check
    _
  $region3: #{tile.13} parent=0 // pred_check_branch
    %3 = sbr.rel (0) target = $region5
  $region4: #{tile.13} parent=0 // pred_region
    _
  $region5: #{tile.13} parent=0 // pred_fallthru
    _
  %v4 = vld [vmem:[%s0] ss:$0 sm:$0xff]
  %5 = vst [vmem:[%s1] sm:$0xf] %v4
  %s6 = scalar_lea.vmem %s1, 32
  %7 = vst [vmem:[%s6] sm:$0xf] %v4
  %s8 = scalar_lea.vmem %s0, 1
  %v9 = vld [vmem:[%s8] ss:$0 sm:$0xff]
  %s10 = scalar_lea.vmem %s1, 4
  %11 = vst [vmem:[%s10] sm:$0xf] %v9
  %s12 = scalar_lea.vmem %s1, 36
  %13 = vst [vmem:[%s12] sm:$0xf] %v9
  %s14 = scalar_lea.vmem %s0, 2
  %v15 = vld [vmem:[%s14] ss:$0 sm:$0xff]
  %s16 = scalar_lea.vmem %s1, 8
  %17 = vst [vmem:[%s16] sm:$0xf] %v15
  %s18 = scalar_lea.vmem %s1, 40
  %19 = vst [vmem:[%s18] sm:$0xf] %v15
  %s20 = scalar_lea.vmem %s0, 3
  %v21 = vld [vmem:[%s20] ss:$0 sm:$0xff]
  %s22 = scalar_lea.vmem %s1, 12
  %23 = vst [vmem:[%s22] sm:$0xf] %v21
  %s24 = scalar_lea.vmem %s1, 44
  %25 = vst [vmem:[%s24] sm:$0xf] %v21
  %s26 = scalar_lea.vmem %s0, 4
  %v27 = vld [vmem:[%s26] ss:$0 sm:$0xff]
  %s28 = scalar_lea.vmem %s1, 16
  %29 = vst [vmem:[%s28] sm:$0xf] %v27
  %s30 = scalar_lea.vmem %s1, 48
  %31 = vst [vmem:[%s30] sm:$0xf] %v27
  %s32 = scalar_lea.vmem %s0, 5
  %v33 = vld [vmem:[%s32] ss:$0 sm:$0xff]
  %s34 = scalar_lea.vmem %s1, 20
  %35 = vst [vmem:[%s34] sm:$0xf] %v33
  %s36 = scalar_lea.vmem %s1, 52
  %37 = vst [vmem:[%s36] sm:$0xf] %v33
  %s38 = scalar_lea.vmem %s0, 6
  %v39 = vld [vmem:[%s38] ss:$0 sm:$0xff]
  %s40 = scalar_lea.vmem %s1, 24
  %41 = vst [vmem:[%s40] sm:$0xf] %v39
  %s42 = scalar_lea.vmem %s1, 56
  %43 = vst [vmem:[%s42] sm:$0xf] %v39
  %s44 = scalar_lea.vmem %s0, 7
  %v45 = vld [vmem:[%s44] ss:$0 sm:$0xff]
  %s46 = scalar_lea.vmem %s1, 28
  %47 = vst [vmem:[%s46] sm:$0xf] %v45
  %s48 = scalar_lea.vmem %s1, 60
  %49 = vst [vmem:[%s48] sm:$0xf] %v45

// kernel: tile.14
$region0: #{tile.14}
  %s0 = inlined_call_operand.vmem [shape: f32[2,8,4,16], index: 0, kind: input, shape index: {}]
  %s1 = inlined_call_operand.vmem [shape: f32[16,64], index: 1, kind: output, shape index: {}]
  $region1: #{tile.14} parent=0
    #allocation0 [shape = 'u8[65536]{0}', space=vmem, size = 0x10000, scoped, tag = 'scoped mem for input reshape']
    %s3 = sshll.u32 1, 4
    %s4 = ssub.s32 %s3, 1
    %s5 = smul.addr 4, 15
    %s6 = scalar_lea.vmem %s0, %s5
    %v7 = vld [vmem:[%s6] sm:%s4]
    %s8 = scalar_lea.vmem [#allocation0], 120
    %9 = vst [vmem:[%s8] sm:%s4] %v7
    %s10 = smul.addr 4, 14
    %s11 = scalar_lea.vmem %s0, %s10
    %v12 = vld [vmem:[%s11] sm:%s4]
    %s13 = scalar_lea.vmem [#allocation0], 112
    %14 = vst [vmem:[%s13] sm:%s4] %v12
    %s15 = smul.addr 4, 13
    %s16 = scalar_lea.vmem %s0, %s15
    %v17 = vld [vmem:[%s16] sm:%s4]
    %s18 = scalar_lea.vmem [#allocation0], 104
    %19 = vst [vmem:[%s18] sm:%s4] %v17
    %s20 = smul.addr 4, 12
    %s21 = scalar_lea.vmem %s0, %s20
    %v22 = vld [vmem:[%s21] sm:%s4]
    %s23 = scalar_lea.vmem [#allocation0], 96
    %24 = vst [vmem:[%s23] sm:%s4] %v22
    %s25 = smul.addr 4, 11
    %s26 = scalar_lea.vmem %s0, %s25
    %v27 = vld [vmem:[%s26] sm:%s4]
    %s28 = scalar_lea.vmem [#allocation0], 88
    %29 = vst [vmem:[%s28] sm:%s4] %v27
    %s30 = smul.addr 4, 10
    %s31 = scalar_lea.vmem %s0, %s30
    %v32 = vld [vmem:[%s31] sm:%s4]
    %s33 = scalar_lea.vmem [#allocation0], 80
    %34 = vst [vmem:[%s33] sm:%s4] %v32
    %s35 = smul.addr 4, 9
    %s36 = scalar_lea.vmem %s0, %s35
    %v37 = vld [vmem:[%s36] sm:%s4]
    %s38 = scalar_lea.vmem [#allocation0], 72
    %39 = vst [vmem:[%s38] sm:%s4] %v37
    %s40 = smul.addr 4, 8
    %s41 = scalar_lea.vmem %s0, %s40
    %v42 = vld [vmem:[%s41] sm:%s4]
    %s43 = scalar_lea.vmem [#allocation0], 64
    %44 = vst [vmem:[%s43] sm:%s4] %v42
    %s45 = smul.addr 4, 7
    %s46 = scalar_lea.vmem %s0, %s45
    %v47 = vld [vmem:[%s46] sm:%s4]
    %s48 = scalar_lea.vmem [#allocation0], 56
    %49 = vst [vmem:[%s48] sm:%s4] %v47
    %s50 = smul.addr 4, 6
    %s51 = scalar_lea.vmem %s0, %s50
    %v52 = vld [vmem:[%s51] sm:%s4]
    %s53 = scalar_lea.vmem [#allocation0], 48
    %54 = vst [vmem:[%s53] sm:%s4] %v52
    %s55 = smul.addr 4, 5
    %s56 = scalar_lea.vmem %s0, %s55
    %v57 = vld [vmem:[%s56] sm:%s4]
    %s58 = scalar_lea.vmem [#allocation0], 40
    %59 = vst [vmem:[%s58] sm:%s4] %v57
    %s60 = smul.addr 4, 4
    %s61 = scalar_lea.vmem %s0, %s60
    %v62 = vld [vmem:[%s61] sm:%s4]
    %s63 = scalar_lea.vmem [#allocation0], 32
    %64 = vst [vmem:[%s63] sm:%s4] %v62
    %s65 = smul.addr 4, 3
    %s66 = scalar_lea.vmem %s0, %s65
    %v67 = vld [vmem:[%s66] sm:%s4]
    %s68 = scalar_lea.vmem [#allocation0], 24
    %69 = vst [vmem:[%s68] sm:%s4] %v67
    %s70 = smul.addr 4, 2
    %s71 = scalar_lea.vmem %s0, %s70
    %v72 = vld [vmem:[%s71] sm:%s4]
    %s73 = scalar_lea.vmem [#allocation0], 16
    %74 = vst [vmem:[%s73] sm:%s4] %v72
    %s75 = scalar_lea.vmem %s0, 4
    %v76 = vld [vmem:[%s75] sm:%s4]
    %s77 = scalar_lea.vmem [#allocation0], 8
    %78 = vst [vmem:[%s77] sm:%s4] %v76
    %v79 = vld [vmem:[%s0] sm:%s4]
    %80 = vst [vmem:[#allocation0] sm:%s4] %v79
    %v81 = vld [vmem:[#allocation0] ss:$8 sm:$0xf]
    %v82 = vld [vmem:[#allocation0] ss:$8 sm:$0xf0]
    %vm83 = vcmask 1047556
    %v84 = vsel %vm83, %v82, %v81
    %vm85 = vcmask 130048
    %86 = vst.msk [vmem:[%s1] sm:$0xff] %vm85, %v84
    %s87 = scalar_lea.vmem [#allocation0], 64
    %v88 = vld [vmem:[%s87] ss:$8 sm:$0xf]
    %s89 = scalar_lea.vmem [#allocation0], 64
    %v90 = vld [vmem:[%s89] ss:$8 sm:$0xf0]
    %vm91 = vcmask 1047556
    %v92 = vsel %vm91, %v90, %v88
    %vm93 = vcmask 130048
    %s94 = scalar_lea.vmem %s1, 8
    %95 = vst.msk [vmem:[%s94] sm:$0xff] %vm93, %v92
    %s96 = scalar_lea.vmem [#allocation0], 3
    %v97 = vld [vmem:[%s96] ss:$8 sm:$0xf]
    %s98 = scalar_lea.vmem [#allocation0], 3
    %v99 = vld [vmem:[%s98] ss:$8 sm:$0xf0]
    %vm100 = vcmask 1047556
    %v101 = vsel %vm100, %v99, %v97
    %102 = vrot.lane.b32.xlu0 %v101, 48
    %v103 = vpop.permute.xlu0 %102
    %vm104 = vcmask 523648
    %105 = vst.msk [vmem:[%s1] sm:$0xff] %vm104, %v103
    %s106 = scalar_lea.vmem [#allocation0], 67
    %v107 = vld [vmem:[%s106] ss:$8 sm:$0xf]
    %s108 = scalar_lea.vmem [#allocation0], 67
    %v109 = vld [vmem:[%s108] ss:$8 sm:$0xf0]
    %vm110 = vcmask 1047556
    %v111 = vsel %vm110, %v109, %v107
    %112 = vrot.lane.b32.xlu0 %v111, 48
    %v113 = vpop.permute.xlu0 %112
    %vm114 = vcmask 523648
    %s115 = scalar_lea.vmem %s1, 8
    %116 = vst.msk [vmem:[%s115] sm:$0xff] %vm114, %v113
    %s117 = scalar_lea.vmem [#allocation0], 2
    %v118 = vld [vmem:[%s117] ss:$8 sm:$0xf]
    %s119 = scalar_lea.vmem [#allocation0], 2
    %v120 = vld [vmem:[%s119] ss:$8 sm:$0xf0]
    %vm121 = vcmask 1047556
    %v122 = vsel %vm121, %v120, %v118
    %123 = vrot.lane.b32.xlu0 %v122, 32
    %v124 = vpop.permute.xlu0 %123
    %vm125 = vcmask 392448
    %126 = vst.msk [vmem:[%s1] sm:$0xff] %vm125, %v124
    %s127 = scalar_lea.vmem [#allocation0], 66
    %v128 = vld [vmem:[%s127] ss:$8 sm:$0xf]
    %s129 = scalar_lea.vmem [#allocation0], 66
    %v130 = vld [vmem:[%s129] ss:$8 sm:$0xf0]
    %vm131 = vcmask 1047556
    %v132 = vsel %vm131, %v130, %v128
    %133 = vrot.lane.b32.xlu0 %v132, 32
    %v134 = vpop.permute.xlu0 %133
    %vm135 = vcmask 392448
    %s136 = scalar_lea.vmem %s1, 8
    %137 = vst.msk [vmem:[%s136] sm:$0xff] %vm135, %v134
    %s138 = scalar_lea.vmem [#allocation0], 1
    %v139 = vld [vmem:[%s138] ss:$8 sm:$0xf]
    %s140 = scalar_lea.vmem [#allocation0], 1
    %v141 = vld [vmem:[%s140] ss:$8 sm:$0xf0]
    %vm142 = vcmask 1047556
    %v143 = vsel %vm142, %v141, %v139
    %144 = vrot.lane.b32.xlu0 %v143, 16
    %v145 = vpop.permute.xlu0 %144
    %vm146 = vcmask 261248
    %147 = vst.msk [vmem:[%s1] sm:$0xff] %vm146, %v145
    %s148 = scalar_lea.vmem [#allocation0], 65
    %v149 = vld [vmem:[%s148] ss:$8 sm:$0xf]
    %s150 = scalar_lea.vmem [#allocation0], 65
    %v151 = vld [vmem:[%s150] ss:$8 sm:$0xf0]
    %vm152 = vcmask 1047556
    %v153 = vsel %vm152, %v151, %v149
    %154 = vrot.lane.b32.xlu0 %v153, 16
    %v155 = vpop.permute.xlu0 %154
    %vm156 = vcmask 261248
    %s157 = scalar_lea.vmem %s1, 8
    %158 = vst.msk [vmem:[%s157] sm:$0xff] %vm156, %v155

// kernel: transformer_block.1
$region0: #{transformer_block.1}
  #allocation0 [shape = 'u32[]', space=smem, size = 0x4, offset = 0x4, fixed_abs, tag = 'smem constant byte address 0x4 - core index']
  #allocation1 [shape = 'u32[144,128]{1,0:T(1,128)}', space=vmem, size = 0x12000, scoped, tag = 'internal scratch']
  %s0 = inlined_call_operand.vmem [shape: f32[16,64], index: 0, kind: input, shape index: {}, may-alias: {0,6}]
  %s1 = inlined_call_operand.vmem [shape: bf16[64,320], index: 1, kind: input, shape index: {}]
  %s2 = inlined_call_operand.vmem [shape: f32[16,272], index: 2, kind: input, shape index: {}]
  %s3 = inlined_call_operand.vmem [shape: bf16[64,64], index: 3, kind: input, shape index: {}]
  %s4 = inlined_call_operand.vmem [shape: bf16[64,384], index: 4, kind: input, shape index: {}]
  %s5 = inlined_call_operand.vmem [shape: bf16[192,64], index: 5, kind: input, shape index: {}]
  %s6 = inlined_call_operand.vmem [shape: f32[16,64], index: 6, kind: output, shape index: {}, may-alias: {0,6}]
  %s7 = sld [smem:[#allocation0]]
  $region34: #{transformer_block.1} parent=0
    _
  %s9 = ssub.s32 1, %s7
  %s10 = scalar_select 0, %s9, %s7
  // Predicated region
  $region2: #{transformer_block.1} parent=0 // pred_check
    _
  $region3: #{transformer_block.1} parent=0 // pred_check_branch
    %12 = sbr.rel (0) target = $region5
  $region4: #{transformer_block.1} parent=0 // pred_region
    _
  $region5: #{transformer_block.1} parent=0 // pred_fallthru
    _
  // Predicated region
  $region6: #{transformer_block.1} parent=0 // pred_check
    _
  $region7: #{transformer_block.1} parent=0 // pred_check_branch
    %14 = sbr.rel (0) target = $region9
  $region8: #{transformer_block.1} parent=0 // pred_region
    _
  $region9: #{transformer_block.1} parent=0 // pred_fallthru
    _
  // Predicated region
  $region10: #{transformer_block.1} parent=0 // pred_check
    _
  $region11: #{transformer_block.1} parent=0 // pred_check_branch
    %16 = sbr.rel (0) target = $region13
  $region12: #{transformer_block.1} parent=0 // pred_region
    _
  $region13: #{transformer_block.1} parent=0 // pred_fallthru
    _
  // Predicated region
  $region14: #{transformer_block.1} parent=0 // pred_check
    _
  $region15: #{transformer_block.1} parent=0 // pred_check_branch
    %18 = sbr.rel (0) target = $region17
  $region16: #{transformer_block.1} parent=0 // pred_region
    _
  $region17: #{transformer_block.1} parent=0 // pred_fallthru
    _
  // Predicated region
  $region18: #{transformer_block.1} parent=0 // pred_check
    _
  $region19: #{transformer_block.1} parent=0 // pred_check_branch
    %20 = sbr.rel (0) target = $region21
  $region20: #{transformer_block.1} parent=0 // pred_region
    _
  $region21: #{transformer_block.1} parent=0 // pred_fallthru
    _
  // Predicated region
  $region22: #{transformer_block.1} parent=0 // pred_check
    _
  $region23: #{transformer_block.1} parent=0 // pred_check_branch
    %22 = sbr.rel (0) target = $region25
  $region24: #{transformer_block.1} parent=0 // pred_region
    _
  $region25: #{transformer_block.1} parent=0 // pred_fallthru
    _
  %v24 = vld [vmem:[%s0] sm:$0xff]
  %v25 = vld [vmem:[%s0 + $0x8] sm:$0xff]
  %v26 = vmul.f32 %v24, %v24
  %v27 = vmul.f32 %v25, %v25
  %vm28 = vcmask 523264
  %v29 = vsel %vm28, %v26, 0.0
  %30 = vadd.xlane.f32.xlu0 %v29
  %v31 = vpop.xlane.xlu0 %30
  %v32 = vsel %vm28, %v27, 0.0
  %33 = vadd.xlane.f32.xlu0 %v32
  %v34 = vpop.xlane.xlu0 %33
  %v35 = vrcp.pop 64.0
  %v36 = vmul.f32 %v31, %v35
  %v37 = vmul.f32 %v34, %v35
  %v38 = vadd.f32 %v36, 1e-05
  %v39 = vadd.f32 %v37, 1e-05
  %v40 = vrsqrt.pop %v38
  %v41 = vrsqrt.pop %v39
  %v42 = vmul.f32 %v24, %v40
  %v43 = vmul.f32 %v25, %v41
  %v44 = vpack.c.bf16 %v43, %v42
  %v45 = vld [vmem:[%s1] sm:$0xff]
  %v46 = vld [vmem:[%s1 + $0x8] sm:$0xf]
  %v47 = vld [vmem:[%s1 + $0xc] sm:$0xff]
  %v48 = vld [vmem:[%s1 + $0x14] sm:$0xf]
  %v49 = vld [vmem:[%s1 + $0x18] sm:$0xff]
  %v50 = vld [vmem:[%s1 + $0x20] sm:$0xf]
  %v51 = vld [vmem:[%s1 + $0x24] sm:$0xff]
  %v52 = vld [vmem:[%s1 + $0x2c] sm:$0xf]
  %v53 = vld [vmem:[%s1 + $0x30] sm:$0xff]
  %v54 = vld [vmem:[%s1 + $0x38] sm:$0xf]
  %v55 = vld [vmem:[%s1 + $0x3c] sm:$0xff]
  %v56 = vld [vmem:[%s1 + $0x44] sm:$0xf]
  %v57 = vld [vmem:[%s1 + $0x48] sm:$0xff]
  %v58 = vld [vmem:[%s1 + $0x50] sm:$0xf]
  %v59 = vld [vmem:[%s1 + $0x54] sm:$0xff]
  %v60 = vld [vmem:[%s1 + $0x5c] sm:$0xf]
  %v77 = vunpack.c.l.b16 %v45
  %v78 = vunpack.c.h.b16 %v45
  %v79 = vunpack.c.l.b16 %v46
  %v80 = vunpack.c.l.b16 %v47
  %v81 = vunpack.c.h.b16 %v47
  %v82 = vunpack.c.l.b16 %v48
  %v83 = vunpack.c.l.b16 %v49
  %v84 = vunpack.c.h.b16 %v49
  %v85 = vunpack.c.l.b16 %v50
  %v86 = vunpack.c.l.b16 %v51
  %v87 = vunpack.c.h.b16 %v51
  %v88 = vunpack.c.l.b16 %v52
  %v89 = vunpack.c.l.b16 %v53
  %v90 = vunpack.c.h.b16 %v53
  %v91 = vunpack.c.l.b16 %v54
  %v92 = vunpack.c.l.b16 %v55
  %v93 = vunpack.c.h.b16 %v55
  %v94 = vunpack.c.l.b16 %v56
  %v95 = vunpack.c.l.b16 %v57
  %v96 = vunpack.c.h.b16 %v57
  %v97 = vunpack.c.l.b16 %v58
  %v98 = vunpack.c.l.b16 %v59
  %v99 = vunpack.c.h.b16 %v59
  %v100 = vunpack.c.l.b16 %v60
  %v101 = vpack.c.b16 %v80, %v77
  %v102 = vpack.c.b16 %v81, %v78
  %v103 = vpack.c.b16 %v82, %v79
  %v104 = vpack.c.b16 %v86, %v83
  %v105 = vpack.c.b16 %v87, %v84
  %v106 = vpack.c.b16 %v88, %v85
  %v107 = vpack.c.b16 %v92, %v89
  %v108 = vpack.c.b16 %v93, %v90
  %v109 = vpack.c.b16 %v94, %v91
  %v110 = vpack.c.b16 %v98, %v95
  %v111 = vpack.c.b16 %v99, %v96
  %v112 = vpack.c.b16 %v100, %v97
  %v126 = vsel %vm28, %v44, 0
  %128 = vmatprep.subr.bf16.mxu0 0
  %129 = vmatpush1.bf16.msra.mxu0 0
  %130 = vmatprep.subr.bf16.mxu0 0
  %131 = vmatpush1.bf16.msra.mxu0 0
  %132 = vmatprep.subr.bf16.mxu0 0
  %133 = vmatpush1.bf16.msra.mxu0 0
  %134 = vmatprep.subr.bf16.mxu0 0
  %135 = vmatpush1.bf16.msra.mxu0 0
  %136 = vmatprep.subr.bf16.mxu0 %v111
  %137 = vmatpush1.bf16.msra.mxu0 %v110
  %138 = vmatprep.subr.bf16.mxu0 %v108
  %139 = vmatpush1.bf16.msra.mxu0 %v107
  %140 = vmatprep.subr.bf16.mxu0 %v105
  %141 = vmatpush1.bf16.msra.mxu0 %v104
  %142 = vmatprep.subr.bf16.mxu0 %v102
  %143 = vmatpush1.bf16.msra.mxu0 %v101
  %144 = vmatprep.subr.bf16.mxu0 0
  %145 = vmatpush2.bf16.msra.mxu0 0
  %146 = vmatprep.subr.bf16.mxu0 0
  %147 = vmatpush2.bf16.msra.mxu0 0
  %148 = vmatprep.subr.bf16.mxu0 0
  %149 = vmatpush2.bf16.msra.mxu0 0
  %150 = vmatprep.subr.bf16.mxu0 0
  %151 = vmatpush2.bf16.msra.mxu0 0
  %152 = vmatprep.subr.bf16.mxu0 0
  %153 = vmatpush2.bf16.msra.mxu0 0
  %154 = vmatprep.subr.bf16.mxu0 0
  %155 = vmatpush2.bf16.msra.mxu0 0
  %156 = vmatprep.subr.bf16.mxu0 0
  %157 = vmatpush2.bf16.msra.mxu0 0
  %158 = vmatprep.subr.bf16.mxu0 0
  %159 = vmatpush2.bf16.msra.mxu0 0
  %160 = vmatprep.mubr.bf16.mxu0 0
  %161 = vmatmul.mubr.bf16.gmra.mxu0 %v126
  %v162 = vpop.f32.mrf.mxu0
  %v163 = vadd.f32 0.0, %v162
  %v164 = vpop.f32.mrf.mxu0
  %v165 = vadd.f32 0.0, %v164
  %v166 = vpop.f32.mrf.mxu0
  %v167 = vadd.f32 0.0, %v166
  %v168 = vpop.f32.mrf.mxu0
  %v169 = vadd.f32 0.0, %v168
  %170 = vdwg.mxu0
  %171 = vmatprep.subr.bf16.mxu0 0
  %172 = vmatpush1.bf16.msra.mxu0 0
  %173 = vmatprep.subr.bf16.mxu0 0
  %174 = vmatpush1.bf16.msra.mxu0 0
  %175 = vmatprep.subr.bf16.mxu0 0
  %176 = vmatpush1.bf16.msra.mxu0 0
  %177 = vmatprep.subr.bf16.mxu0 0
  %178 = vmatpush1.bf16.msra.mxu0 0
  %179 = vmatprep.subr.bf16.mxu0 0
  %180 = vmatpush1.bf16.msra.mxu0 %v112
  %181 = vmatprep.subr.bf16.mxu0 0
  %182 = vmatpush1.bf16.msra.mxu0 %v109
  %183 = vmatprep.subr.bf16.mxu0 0
  %184 = vmatpush1.bf16.msra.mxu0 %v106
  %185 = vmatprep.subr.bf16.mxu0 0
  %186 = vmatpush1.bf16.msra.mxu0 %v103
  %187 = vmatprep.subr.bf16.mxu0 0
  %188 = vmatpush2.bf16.msra.mxu0 0
  %189 = vmatprep.subr.bf16.mxu0 0
  %190 = vmatpush2.bf16.msra.mxu0 0
  %191 = vmatprep.subr.bf16.mxu0 0
  %192 = vmatpush2.bf16.msra.mxu0 0
  %193 = vmatprep.subr.bf16.mxu0 0
  %194 = vmatpush2.bf16.msra.mxu0 0
  %195 = vmatprep.subr.bf16.mxu0 0
  %196 = vmatpush2.bf16.msra.mxu0 0
  %197 = vmatprep.subr.bf16.mxu0 0
  %198 = vmatpush2.bf16.msra.mxu0 0
  %199 = vmatprep.subr.bf16.mxu0 0
  %200 = vmatpush2.bf16.msra.mxu0 0
  %201 = vmatprep.subr.bf16.mxu0 0
  %202 = vmatpush2.bf16.msra.mxu0 0
  %203 = vmatprep.mubr.bf16.mxu0 0
  %204 = vmatmul.mubr.bf16.gmra.mxu0 %v126
  %v205 = vpop.f32.mrf.mxu0
  %v206 = vadd.f32 0.0, %v205
  %v207 = vpop.f32.mrf.mxu0
  %v208 = vpop.f32.mrf.mxu0
  %v209 = vadd.f32 0.0, %v208
  %v210 = vpop.f32.mrf.mxu0
  %211 = vdwg.mxu0
  %v212 = vld [vmem:[%s2] sm:$0xff]
  %v213 = vld [vmem:[%s2 + $0x8] sm:$0xff]
  %v214 = vld [vmem:[%s2 + $0x18] sm:$0xff]
  %v215 = vld [vmem:[%s2 + $0x20] sm:$0xff]
  %v216 = vmul.f32 %v163, %v212
  %v217 = vmul.f32 %v165, %v213
  %v218 = vmul.f32 %v167, %v214
  %v219 = vmul.f32 %v169, %v215
  %222 = vrot.lane.b32.xlu0 %v216, 64
  %v223 = vpop.permute.xlu0 %222
  %224 = vrot.lane.b32.xlu0 %v218, 64
  %v225 = vpop.permute.xlu0 %224
  %v228 = vadd.f32 %v216, %v223
  %v229 = vadd.f32 %v218, %v225
  %232 = vrot.lane.b32.xlu0 %v217, 64
  %v233 = vpop.permute.xlu0 %232
  %234 = vrot.lane.b32.xlu0 %v219, 64
  %v235 = vpop.permute.xlu0 %234
  %v238 = vadd.f32 %v217, %v233
  %v239 = vadd.f32 %v219, %v235
  %242 = vrot.lane.b32.xlu0 %v228, 112
  %v243 = vpop.permute.xlu0 %242
  %244 = vrot.lane.b32.xlu0 %v229, 112
  %v245 = vpop.permute.xlu0 %244
  %248 = vrot.lane.b32.xlu0 %v228, 96
  %v249 = vpop.permute.xlu0 %248
  %250 = vrot.lane.b32.xlu0 %v229, 96
  %v251 = vpop.permute.xlu0 %250
  %254 = vrot.lane.b32.xlu0 %v228, 80
  %v255 = vpop.permute.xlu0 %254
  %256 = vrot.lane.b32.xlu0 %v229, 80
  %v257 = vpop.permute.xlu0 %256
  %v260 = vcombine.low %v228, %v249
  %v261 = vcombine.high %v228, %v249
  %v263 = vunpack.c.l.s4 1983009808
  %v264 = vunpack.c.0.s8 %v263
  %v265 = vlaneseq
  %v266 = vshrl.u32 %v265, 7
  %v267 = vsub.s32 %v264, %v266
  %v268 = vrot.slane %v260, %v267
  %v270 = vunpack.c.l.s4 1983009808
  %v271 = vunpack.c.0.s8 %v270
  %v272 = vlaneseq
  %v273 = vshrl.u32 %v272, 7
  %v274 = vsub.s32 %v271, %v273
  %v275 = vrot.slane %v261, %v274
  %v276 = vcombine.low %v243, %v255
  %v277 = vcombine.high %v243, %v255
  %v279 = vunpack.c.l.s4 1983009808
  %v280 = vunpack.c.0.s8 %v279
  %v281 = vlaneseq
  %v282 = vshrl.u32 %v281, 7
  %v283 = vsub.s32 %v280, %v282
  %v284 = vrot.slane %v276, %v283
  %v286 = vunpack.c.l.s4 1983009808
  %v287 = vunpack.c.0.s8 %v286
  %v288 = vlaneseq
  %v289 = vshrl.u32 %v288, 7
  %v290 = vsub.s32 %v287, %v289
  %v291 = vrot.slane %v277, %v290
  %v292 = vcombine.low %v268, %v284
  %v293 = vcombine.high %v268, %v284
  %v295 = vunpack.c.l.s4 1934713408
  %v296 = vunpack.c.0.s8 %v295
  %v297 = vlaneseq
  %v298 = vshrl.u32 %v297, 7
  %v299 = vsub.s32 %v296, %v298
  %v300 = vrot.slane %v292, %v299
  %v302 = vunpack.c.l.s4 1934713408
  %v303 = vunpack.c.0.s8 %v302
  %v304 = vlaneseq
  %v305 = vshrl.u32 %v304, 7
  %v306 = vsub.s32 %v303, %v305
  %v307 = vrot.slane %v293, %v306
  %v308 = vcombine.low %v275, %v291
  %v309 = vcombine.high %v275, %v291
  %v311 = vunpack.c.l.s4 1934713408
  %v312 = vunpack.c.0.s8 %v311
  %v313 = vlaneseq
  %v314 = vshrl.u32 %v313, 7
  %v315 = vsub.s32 %v312, %v314
  %v316 = vrot.slane %v308, %v315
  %v318 = vunpack.c.l.s4 1934713408
  %v319 = vunpack.c.0.s8 %v318
  %v320 = vlaneseq
  %v321 = vshrl.u32 %v320, 7
  %v322 = vsub.s32 %v319, %v321
  %v323 = vrot.slane %v309, %v322
  %v324 = vcombine.high %v300, 0.0
  %v325 = vcombine.high %v307, 0.0
  %v326 = vcombine.high %v316, 0.0
  %v327 = vcombine.high %v323, 0.0
  %v328 = vcombine.low %v229, %v251
  %v329 = vcombine.high %v229, %v251
  %v331 = vunpack.c.l.s4 1983009808
  %v332 = vunpack.c.0.s8 %v331
  %v333 = vlaneseq
  %v334 = vshrl.u32 %v333, 7
  %v335 = vsub.s32 %v332, %v334
  %v336 = vrot.slane %v328, %v335
  %v338 = vunpack.c.l.s4 1983009808
  %v339 = vunpack.c.0.s8 %v338
  %v340 = vlaneseq
  %v341 = vshrl.u32 %v340, 7
  %v342 = vsub.s32 %v339, %v341
  %v343 = vrot.slane %v329, %v342
  %v344 = vcombine.low %v245, %v257
  %v345 = vcombine.high %v245, %v257
  %v347 = vunpack.c.l.s4 1983009808
  %v348 = vunpack.c.0.s8 %v347
  %v349 = vlaneseq
  %v350 = vshrl.u32 %v349, 7
  %v351 = vsub.s32 %v348, %v350
  %v352 = vrot.slane %v344, %v351
  %v354 = vunpack.c.l.s4 1983009808
  %v355 = vunpack.c.0.s8 %v354
  %v356 = vlaneseq
  %v357 = vshrl.u32 %v356, 7
  %v358 = vsub.s32 %v355, %v357
  %v359 = vrot.slane %v345, %v358
  %v360 = vcombine.low %v336, %v352
  %v361 = vcombine.high %v336, %v352
  %v363 = vunpack.c.l.s4 1934713408
  %v364 = vunpack.c.0.s8 %v363
  %v365 = vlaneseq
  %v366 = vshrl.u32 %v365, 7
  %v367 = vsub.s32 %v364, %v366
  %v368 = vrot.slane %v360, %v367
  %v370 = vunpack.c.l.s4 1934713408
  %v371 = vunpack.c.0.s8 %v370
  %v372 = vlaneseq
  %v373 = vshrl.u32 %v372, 7
  %v374 = vsub.s32 %v371, %v373
  %v375 = vrot.slane %v361, %v374
  %v376 = vcombine.low %v343, %v359
  %v377 = vcombine.high %v343, %v359
  %v379 = vunpack.c.l.s4 1934713408
  %v380 = vunpack.c.0.s8 %v379
  %v381 = vlaneseq
  %v382 = vshrl.u32 %v381, 7
  %v383 = vsub.s32 %v380, %v382
  %v384 = vrot.slane %v376, %v383
  %v386 = vunpack.c.l.s4 1934713408
  %v387 = vunpack.c.0.s8 %v386
  %v388 = vlaneseq
  %v389 = vshrl.u32 %v388, 7
  %v390 = vsub.s32 %v387, %v389
  %v391 = vrot.slane %v377, %v390
  %v392 = vcombine.high %v368, 0.0
  %v393 = vcombine.high %v375, 0.0
  %v394 = vcombine.high %v384, 0.0
  %v395 = vcombine.high %v391, 0.0
  %v396 = vcombine.low %v300, %v307
  %v398 = vunpack.c.l.s4 1983009808
  %v399 = vunpack.c.0.s8 %v398
  %v400 = vlaneseq
  %v401 = vshrl.u32 %v400, 7
  %v402 = vsub.s32 %v399, %v401
  %v403 = vrot.slane %v396, %v402
  %v404 = vcombine.low %v324, %v325
  %v406 = vunpack.c.l.s4 1983009808
  %v407 = vunpack.c.0.s8 %v406
  %v408 = vlaneseq
  %v409 = vshrl.u32 %v408, 7
  %v410 = vsub.s32 %v407, %v409
  %v411 = vrot.slane %v404, %v410
  %v412 = vcombine.low %v316, %v323
  %v414 = vunpack.c.l.s4 1983009808
  %v415 = vunpack.c.0.s8 %v414
  %v416 = vlaneseq
  %v417 = vshrl.u32 %v416, 7
  %v418 = vsub.s32 %v415, %v417
  %v419 = vrot.slane %v412, %v418
  %v420 = vcombine.low %v326, %v327
  %v422 = vunpack.c.l.s4 1983009808
  %v423 = vunpack.c.0.s8 %v422
  %v424 = vlaneseq
  %v425 = vshrl.u32 %v424, 7
  %v426 = vsub.s32 %v423, %v425
  %v427 = vrot.slane %v420, %v426
  %v428 = vcombine.low %v403, %v411
  %v429 = vcombine.high %v403, %v411
  %v431 = vunpack.c.l.s4 1934713408
  %v432 = vunpack.c.0.s8 %v431
  %v433 = vlaneseq
  %v434 = vshrl.u32 %v433, 7
  %v435 = vsub.s32 %v432, %v434
  %v436 = vrot.slane %v428, %v435
  %v438 = vunpack.c.l.s4 1934713408
  %v439 = vunpack.c.0.s8 %v438
  %v440 = vlaneseq
  %v441 = vshrl.u32 %v440, 7
  %v442 = vsub.s32 %v439, %v441
  %v443 = vrot.slane %v429, %v442
  %v444 = vcombine.low %v419, %v427
  %v445 = vcombine.high %v419, %v427
  %v447 = vunpack.c.l.s4 1934713408
  %v448 = vunpack.c.0.s8 %v447
  %v449 = vlaneseq
  %v450 = vshrl.u32 %v449, 7
  %v451 = vsub.s32 %v448, %v450
  %v452 = vrot.slane %v444, %v451
  %v454 = vunpack.c.l.s4 1934713408
  %v455 = vunpack.c.0.s8 %v454
  %v456 = vlaneseq
  %v457 = vshrl.u32 %v456, 7
  %v458 = vsub.s32 %v455, %v457
  %v459 = vrot.slane %v445, %v458
  %v460 = vcombine.low %v436, %v452
  %v461 = vcombine.high %v436, %v452
  %v462 = vcombine.low %v443, %v459
  %v463 = vcombine.high %v443, %v459
  %v464 = vcombine.low %v368, %v375
  %v466 = vunpack.c.l.s4 1983009808
  %v467 = vunpack.c.0.s8 %v466
  %v468 = vlaneseq
  %v469 = vshrl.u32 %v468, 7
  %v470 = vsub.s32 %v467, %v469
  %v471 = vrot.slane %v464, %v470
  %v472 = vcombine.low %v392, %v393
  %v474 = vunpack.c.l.s4 1983009808
  %v475 = vunpack.c.0.s8 %v474
  %v476 = vlaneseq
  %v477 = vshrl.u32 %v476, 7
  %v478 = vsub.s32 %v475, %v477
  %v479 = vrot.slane %v472, %v478
  %v480 = vcombine.low %v384, %v391
  %v482 = vunpack.c.l.s4 1983009808
  %v483 = vunpack.c.0.s8 %v482
  %v484 = vlaneseq
  %v485 = vshrl.u32 %v484, 7
  %v486 = vsub.s32 %v483, %v485
  %v487 = vrot.slane %v480, %v486
  %v488 = vcombine.low %v394, %v395
  %v490 = vunpack.c.l.s4 1983009808
  %v491 = vunpack.c.0.s8 %v490
  %v492 = vlaneseq
  %v493 = vshrl.u32 %v492, 7
  %v494 = vsub.s32 %v491, %v493
  %v495 = vrot.slane %v488, %v494
  %v496 = vcombine.low %v471, %v479
  %v497 = vcombine.high %v471, %v479
  %v499 = vunpack.c.l.s4 1934713408
  %v500 = vunpack.c.0.s8 %v499
  %v501 = vlaneseq
  %v502 = vshrl.u32 %v501, 7
  %v503 = vsub.s32 %v500, %v502
  %v504 = vrot.slane %v496, %v503
  %v506 = vunpack.c.l.s4 1934713408
  %v507 = vunpack.c.0.s8 %v506
  %v508 = vlaneseq
  %v509 = vshrl.u32 %v508, 7
  %v510 = vsub.s32 %v507, %v509
  %v511 = vrot.slane %v497, %v510
  %v512 = vcombine.low %v487, %v495
  %v513 = vcombine.high %v487, %v495
  %v515 = vunpack.c.l.s4 1934713408
  %v516 = vunpack.c.0.s8 %v515
  %v517 = vlaneseq
  %v518 = vshrl.u32 %v517, 7
  %v519 = vsub.s32 %v516, %v518
  %v520 = vrot.slane %v512, %v519
  %v522 = vunpack.c.l.s4 1934713408
  %v523 = vunpack.c.0.s8 %v522
  %v524 = vlaneseq
  %v525 = vshrl.u32 %v524, 7
  %v526 = vsub.s32 %v523, %v525
  %v527 = vrot.slane %v513, %v526
  %v528 = vcombine.low %v504, %v520
  %v529 = vcombine.high %v504, %v520
  %v530 = vcombine.low %v511, %v527
  %v531 = vcombine.high %v511, %v527
  %v532 = vpack.c.bf16 %v528, %v460
  %v533 = vpack.c.bf16 %v529, %v461
  %v534 = vpack.c.bf16 %v530, %v462
  %v535 = vpack.c.bf16 %v531, %v463
  %538 = vrot.lane.b32.xlu0 %v238, 112
  %v539 = vpop.permute.xlu0 %538
  %540 = vrot.lane.b32.xlu0 %v239, 112
  %v541 = vpop.permute.xlu0 %540
  %544 = vrot.lane.b32.xlu0 %v238, 96
  %v545 = vpop.permute.xlu0 %544
  %546 = vrot.lane.b32.xlu0 %v239, 96
  %v547 = vpop.permute.xlu0 %546
  %550 = vrot.lane.b32.xlu0 %v238, 80
  %v551 = vpop.permute.xlu0 %550
  %552 = vrot.lane.b32.xlu0 %v239, 80
  %v553 = vpop.permute.xlu0 %552
  %v556 = vcombine.low %v238, %v545
  %v557 = vcombine.high %v238, %v545
  %v559 = vunpack.c.l.s4 1983009808
  %v560 = vunpack.c.0.s8 %v559
  %v561 = vlaneseq
  %v562 = vshrl.u32 %v561, 7
  %v563 = vsub.s32 %v560, %v562
  %v564 = vrot.slane %v556, %v563
  %v566 = vunpack.c.l.s4 1983009808
  %v567 = vunpack.c.0.s8 %v566
  %v568 = vlaneseq
  %v569 = vshrl.u32 %v568, 7
  %v570 = vsub.s32 %v567, %v569
  %v571 = vrot.slane %v557, %v570
  %v572 = vcombine.low %v539, %v551
  %v573 = vcombine.high %v539, %v551
  %v575 = vunpack.c.l.s4 1983009808
  %v576 = vunpack.c.0.s8 %v575
  %v577 = vlaneseq
  %v578 = vshrl.u32 %v577, 7
  %v579 = vsub.s32 %v576, %v578
  %v580 = vrot.slane %v572, %v579
  %v582 = vunpack.c.l.s4 1983009808
  %v583 = vunpack.c.0.s8 %v582
  %v584 = vlaneseq
  %v585 = vshrl.u32 %v584, 7
  %v586 = vsub.s32 %v583, %v585
  %v587 = vrot.slane %v573, %v586
  %v588 = vcombine.low %v564, %v580
  %v589 = vcombine.high %v564, %v580
  %v591 = vunpack.c.l.s4 1934713408
  %v592 = vunpack.c.0.s8 %v591
  %v593 = vlaneseq
  %v594 = vshrl.u32 %v593, 7
  %v595 = vsub.s32 %v592, %v594
  %v596 = vrot.slane %v588, %v595
  %v598 = vunpack.c.l.s4 1934713408
  %v599 = vunpack.c.0.s8 %v598
  %v600 = vlaneseq
  %v601 = vshrl.u32 %v600, 7
  %v602 = vsub.s32 %v599, %v601
  %v603 = vrot.slane %v589, %v602
  %v604 = vcombine.low %v571, %v587
  %v605 = vcombine.high %v571, %v587
  %v607 = vunpack.c.l.s4 1934713408
  %v608 = vunpack.c.0.s8 %v607
  %v609 = vlaneseq
  %v610 = vshrl.u32 %v609, 7
  %v611 = vsub.s32 %v608, %v610
  %v612 = vrot.slane %v604, %v611
  %v614 = vunpack.c.l.s4 1934713408
  %v615 = vunpack.c.0.s8 %v614
  %v616 = vlaneseq
  %v617 = vshrl.u32 %v616, 7
  %v618 = vsub.s32 %v615, %v617
  %v619 = vrot.slane %v605, %v618
  %v620 = vcombine.high %v596, 0.0
  %v621 = vcombine.high %v603, 0.0
  %v622 = vcombine.high %v612, 0.0
  %v623 = vcombine.high %v619, 0.0
  %v624 = vcombine.low %v239, %v547
  %v625 = vcombine.high %v239, %v547
  %v627 = vunpack.c.l.s4 1983009808
  %v628 = vunpack.c.0.s8 %v627
  %v629 = vlaneseq
  %v630 = vshrl.u32 %v629, 7
  %v631 = vsub.s32 %v628, %v630
  %v632 = vrot.slane %v624, %v631
  %v634 = vunpack.c.l.s4 1983009808
  %v635 = vunpack.c.0.s8 %v634
  %v636 = vlaneseq
  %v637 = vshrl.u32 %v636, 7
  %v638 = vsub.s32 %v635, %v637
  %v639 = vrot.slane %v625, %v638
  %v640 = vcombine.low %v541, %v553
  %v641 = vcombine.high %v541, %v553
  %v643 = vunpack.c.l.s4 1983009808
  %v644 = vunpack.c.0.s8 %v643
  %v645 = vlaneseq
  %v646 = vshrl.u32 %v645, 7
  %v647 = vsub.s32 %v644, %v646
  %v648 = vrot.slane %v640, %v647
  %v650 = vunpack.c.l.s4 1983009808
  %v651 = vunpack.c.0.s8 %v650
  %v652 = vlaneseq
  %v653 = vshrl.u32 %v652, 7
  %v654 = vsub.s32 %v651, %v653
  %v655 = vrot.slane %v641, %v654
  %v656 = vcombine.low %v632, %v648
  %v657 = vcombine.high %v632, %v648
  %v659 = vunpack.c.l.s4 1934713408
  %v660 = vunpack.c.0.s8 %v659
  %v661 = vlaneseq
  %v662 = vshrl.u32 %v661, 7
  %v663 = vsub.s32 %v660, %v662
  %v664 = vrot.slane %v656, %v663
  %v666 = vunpack.c.l.s4 1934713408
  %v667 = vunpack.c.0.s8 %v666
  %v668 = vlaneseq
  %v669 = vshrl.u32 %v668, 7
  %v670 = vsub.s32 %v667, %v669
  %v671 = vrot.slane %v657, %v670
  %v672 = vcombine.low %v639, %v655
  %v673 = vcombine.high %v639, %v655
  %v675 = vunpack.c.l.s4 1934713408
  %v676 = vunpack.c.0.s8 %v675
  %v677 = vlaneseq
  %v678 = vshrl.u32 %v677, 7
  %v679 = vsub.s32 %v676, %v678
  %v680 = vrot.slane %v672, %v679
  %v682 = vunpack.c.l.s4 1934713408
  %v683 = vunpack.c.0.s8 %v682
  %v684 = vlaneseq
  %v685 = vshrl.u32 %v684, 7
  %v686 = vsub.s32 %v683, %v685
  %v687 = vrot.slane %v673, %v686
  %v688 = vcombine.high %v664, 0.0
  %v689 = vcombine.high %v671, 0.0
  %v690 = vcombine.high %v680, 0.0
  %v691 = vcombine.high %v687, 0.0
  %v692 = vcombine.low %v596, %v603
  %v694 = vunpack.c.l.s4 1983009808
  %v695 = vunpack.c.0.s8 %v694
  %v696 = vlaneseq
  %v697 = vshrl.u32 %v696, 7
  %v698 = vsub.s32 %v695, %v697
  %v699 = vrot.slane %v692, %v698
  %v700 = vcombine.low %v620, %v621
  %v702 = vunpack.c.l.s4 1983009808
  %v703 = vunpack.c.0.s8 %v702
  %v704 = vlaneseq
  %v705 = vshrl.u32 %v704, 7
  %v706 = vsub.s32 %v703, %v705
  %v707 = vrot.slane %v700, %v706
  %v708 = vcombine.low %v612, %v619
  %v710 = vunpack.c.l.s4 1983009808
  %v711 = vunpack.c.0.s8 %v710
  %v712 = vlaneseq
  %v713 = vshrl.u32 %v712, 7
  %v714 = vsub.s32 %v711, %v713
  %v715 = vrot.slane %v708, %v714
  %v716 = vcombine.low %v622, %v623
  %v718 = vunpack.c.l.s4 1983009808
  %v719 = vunpack.c.0.s8 %v718
  %v720 = vlaneseq
  %v721 = vshrl.u32 %v720, 7
  %v722 = vsub.s32 %v719, %v721
  %v723 = vrot.slane %v716, %v722
  %v724 = vcombine.low %v699, %v707
  %v725 = vcombine.high %v699, %v707
  %v727 = vunpack.c.l.s4 1934713408
  %v728 = vunpack.c.0.s8 %v727
  %v729 = vlaneseq
  %v730 = vshrl.u32 %v729, 7
  %v731 = vsub.s32 %v728, %v730
  %v732 = vrot.slane %v724, %v731
  %v734 = vunpack.c.l.s4 1934713408
  %v735 = vunpack.c.0.s8 %v734
  %v736 = vlaneseq
  %v737 = vshrl.u32 %v736, 7
  %v738 = vsub.s32 %v735, %v737
  %v739 = vrot.slane %v725, %v738
  %v740 = vcombine.low %v715, %v723
  %v741 = vcombine.high %v715, %v723
  %v743 = vunpack.c.l.s4 1934713408
  %v744 = vunpack.c.0.s8 %v743
  %v745 = vlaneseq
  %v746 = vshrl.u32 %v745, 7
  %v747 = vsub.s32 %v744, %v746
  %v748 = vrot.slane %v740, %v747
  %v750 = vunpack.c.l.s4 1934713408
  %v751 = vunpack.c.0.s8 %v750
  %v752 = vlaneseq
  %v753 = vshrl.u32 %v752, 7
  %v754 = vsub.s32 %v751, %v753
  %v755 = vrot.slane %v741, %v754
  %v756 = vcombine.low %v732, %v748
  %v757 = vcombine.high %v732, %v748
  %v758 = vcombine.low %v739, %v755
  %v759 = vcombine.high %v739, %v755
  %v760 = vcombine.low %v664, %v671
  %v762 = vunpack.c.l.s4 1983009808
  %v763 = vunpack.c.0.s8 %v762
  %v764 = vlaneseq
  %v765 = vshrl.u32 %v764, 7
  %v766 = vsub.s32 %v763, %v765
  %v767 = vrot.slane %v760, %v766
  %v768 = vcombine.low %v688, %v689
  %v770 = vunpack.c.l.s4 1983009808
  %v771 = vunpack.c.0.s8 %v770
  %v772 = vlaneseq
  %v773 = vshrl.u32 %v772, 7
  %v774 = vsub.s32 %v771, %v773
  %v775 = vrot.slane %v768, %v774
  %v776 = vcombine.low %v680, %v687
  %v778 = vunpack.c.l.s4 1983009808
  %v779 = vunpack.c.0.s8 %v778
  %v780 = vlaneseq
  %v781 = vshrl.u32 %v780, 7
  %v782 = vsub.s32 %v779, %v781
  %v783 = vrot.slane %v776, %v782
  %v784 = vcombine.low %v690, %v691
  %v786 = vunpack.c.l.s4 1983009808
  %v787 = vunpack.c.0.s8 %v786
  %v788 = vlaneseq
  %v789 = vshrl.u32 %v788, 7
  %v790 = vsub.s32 %v787, %v789
  %v791 = vrot.slane %v784, %v790
  %v792 = vcombine.low %v767, %v775
  %v793 = vcombine.high %v767, %v775
  %v795 = vunpack.c.l.s4 1934713408
  %v796 = vunpack.c.0.s8 %v795
  %v797 = vlaneseq
  %v798 = vshrl.u32 %v797, 7
  %v799 = vsub.s32 %v796, %v798
  %v800 = vrot.slane %v792, %v799
  %v802 = vunpack.c.l.s4 1934713408
  %v803 = vunpack.c.0.s8 %v802
  %v804 = vlaneseq
  %v805 = vshrl.u32 %v804, 7
  %v806 = vsub.s32 %v803, %v805
  %v807 = vrot.slane %v793, %v806
  %v808 = vcombine.low %v783, %v791
  %v809 = vcombine.high %v783, %v791
  %v811 = vunpack.c.l.s4 1934713408
  %v812 = vunpack.c.0.s8 %v811
  %v813 = vlaneseq
  %v814 = vshrl.u32 %v813, 7
  %v815 = vsub.s32 %v812, %v814
  %v816 = vrot.slane %v808, %v815
  %v818 = vunpack.c.l.s4 1934713408
  %v819 = vunpack.c.0.s8 %v818
  %v820 = vlaneseq
  %v821 = vshrl.u32 %v820, 7
  %v822 = vsub.s32 %v819, %v821
  %v823 = vrot.slane %v809, %v822
  %v824 = vcombine.low %v800, %v816
  %v825 = vcombine.high %v800, %v816
  %v826 = vcombine.low %v807, %v823
  %v827 = vcombine.high %v807, %v823
  %v828 = vpack.c.bf16 %v824, %v756
  %v829 = vpack.c.bf16 %v825, %v757
  %v830 = vpack.c.bf16 %v826, %v758
  %v831 = vpack.c.bf16 %v827, %v759
  %834 = vrot.lane.b32.xlu0 %v206, 112
  %v835 = vpop.permute.xlu0 %834
  %836 = vrot.lane.b32.xlu0 %v209, 112
  %v837 = vpop.permute.xlu0 %836
  %840 = vrot.lane.b32.xlu0 %v206, 96
  %v841 = vpop.permute.xlu0 %840
  %842 = vrot.lane.b32.xlu0 %v209, 96
  %v843 = vpop.permute.xlu0 %842
  %846 = vrot.lane.b32.xlu0 %v206, 80
  %v847 = vpop.permute.xlu0 %846
  %848 = vrot.lane.b32.xlu0 %v209, 80
  %v849 = vpop.permute.xlu0 %848
  %v852 = vcombine.low %v206, %v841
  %v853 = vcombine.high %v206, %v841
  %v855 = vunpack.c.l.s4 1983009808
  %v856 = vunpack.c.0.s8 %v855
  %v857 = vlaneseq
  %v858 = vshrl.u32 %v857, 7
  %v859 = vsub.s32 %v856, %v858
  %v860 = vrot.slane %v852, %v859
  %v862 = vunpack.c.l.s4 1983009808
  %v863 = vunpack.c.0.s8 %v862
  %v864 = vlaneseq
  %v865 = vshrl.u32 %v864, 7
  %v866 = vsub.s32 %v863, %v865
  %v867 = vrot.slane %v853, %v866
  %v868 = vcombine.low %v835, %v847
  %v869 = vcombine.high %v835, %v847
  %v871 = vunpack.c.l.s4 1983009808
  %v872 = vunpack.c.0.s8 %v871
  %v873 = vlaneseq
  %v874 = vshrl.u32 %v873, 7
  %v875 = vsub.s32 %v872, %v874
  %v876 = vrot.slane %v868, %v875
  %v878 = vunpack.c.l.s4 1983009808
  %v879 = vunpack.c.0.s8 %v878
  %v880 = vlaneseq
  %v881 = vshrl.u32 %v880, 7
  %v882 = vsub.s32 %v879, %v881
  %v883 = vrot.slane %v869, %v882
  %v884 = vcombine.low %v860, %v876
  %v885 = vcombine.high %v860, %v876
  %v887 = vunpack.c.l.s4 1934713408
  %v888 = vunpack.c.0.s8 %v887
  %v889 = vlaneseq
  %v890 = vshrl.u32 %v889, 7
  %v891 = vsub.s32 %v888, %v890
  %v892 = vrot.slane %v884, %v891
  %v894 = vunpack.c.l.s4 1934713408
  %v895 = vunpack.c.0.s8 %v894
  %v896 = vlaneseq
  %v897 = vshrl.u32 %v896, 7
  %v898 = vsub.s32 %v895, %v897
  %v899 = vrot.slane %v885, %v898
  %v900 = vcombine.low %v867, %v883
  %v901 = vcombine.high %v867, %v883
  %v903 = vunpack.c.l.s4 1934713408
  %v904 = vunpack.c.0.s8 %v903
  %v905 = vlaneseq
  %v906 = vshrl.u32 %v905, 7
  %v907 = vsub.s32 %v904, %v906
  %v908 = vrot.slane %v900, %v907
  %v910 = vunpack.c.l.s4 1934713408
  %v911 = vunpack.c.0.s8 %v910
  %v912 = vlaneseq
  %v913 = vshrl.u32 %v912, 7
  %v914 = vsub.s32 %v911, %v913
  %v915 = vrot.slane %v901, %v914
  %v916 = vcombine.high %v892, 0.0
  %v917 = vcombine.high %v899, 0.0
  %v918 = vcombine.high %v908, 0.0
  %v919 = vcombine.high %v915, 0.0
  %v920 = vcombine.low %v209, %v843
  %v921 = vcombine.high %v209, %v843
  %v923 = vunpack.c.l.s4 1983009808
  %v924 = vunpack.c.0.s8 %v923
  %v925 = vlaneseq
  %v926 = vshrl.u32 %v925, 7
  %v927 = vsub.s32 %v924, %v926
  %v928 = vrot.slane %v920, %v927
  %v930 = vunpack.c.l.s4 1983009808
  %v931 = vunpack.c.0.s8 %v930
  %v932 = vlaneseq
  %v933 = vshrl.u32 %v932, 7
  %v934 = vsub.s32 %v931, %v933
  %v935 = vrot.slane %v921, %v934
  %v936 = vcombine.low %v837, %v849
  %v937 = vcombine.high %v837, %v849
  %v939 = vunpack.c.l.s4 1983009808
  %v940 = vunpack.c.0.s8 %v939
  %v941 = vlaneseq
  %v942 = vshrl.u32 %v941, 7
  %v943 = vsub.s32 %v940, %v942
  %v944 = vrot.slane %v936, %v943
  %v946 = vunpack.c.l.s4 1983009808
  %v947 = vunpack.c.0.s8 %v946
  %v948 = vlaneseq
  %v949 = vshrl.u32 %v948, 7
  %v950 = vsub.s32 %v947, %v949
  %v951 = vrot.slane %v937, %v950
  %v952 = vcombine.low %v928, %v944
  %v953 = vcombine.high %v928, %v944
  %v955 = vunpack.c.l.s4 1934713408
  %v956 = vunpack.c.0.s8 %v955
  %v957 = vlaneseq
  %v958 = vshrl.u32 %v957, 7
  %v959 = vsub.s32 %v956, %v958
  %v960 = vrot.slane %v952, %v959
  %v962 = vunpack.c.l.s4 1934713408
  %v963 = vunpack.c.0.s8 %v962
  %v964 = vlaneseq
  %v965 = vshrl.u32 %v964, 7
  %v966 = vsub.s32 %v963, %v965
  %v967 = vrot.slane %v953, %v966
  %v968 = vcombine.low %v935, %v951
  %v969 = vcombine.high %v935, %v951
  %v971 = vunpack.c.l.s4 1934713408
  %v972 = vunpack.c.0.s8 %v971
  %v973 = vlaneseq
  %v974 = vshrl.u32 %v973, 7
  %v975 = vsub.s32 %v972, %v974
  %v976 = vrot.slane %v968, %v975
  %v978 = vunpack.c.l.s4 1934713408
  %v979 = vunpack.c.0.s8 %v978
  %v980 = vlaneseq
  %v981 = vshrl.u32 %v980, 7
  %v982 = vsub.s32 %v979, %v981
  %v983 = vrot.slane %v969, %v982
  %v984 = vcombine.high %v960, 0.0
  %v985 = vcombine.high %v967, 0.0
  %v986 = vcombine.high %v976, 0.0
  %v987 = vcombine.high %v983, 0.0
  %v988 = vcombine.low %v892, %v899
  %v990 = vunpack.c.l.s4 1983009808
  %v991 = vunpack.c.0.s8 %v990
  %v992 = vlaneseq
  %v993 = vshrl.u32 %v992, 7
  %v994 = vsub.s32 %v991, %v993
  %v995 = vrot.slane %v988, %v994
  %v996 = vcombine.low %v916, %v917
  %v998 = vunpack.c.l.s4 1983009808
  %v999 = vunpack.c.0.s8 %v998
  %v1000 = vlaneseq
  %v1001 = vshrl.u32 %v1000, 7
  %v1002 = vsub.s32 %v999, %v1001
  %v1003 = vrot.slane %v996, %v1002
  %v1004 = vcombine.low %v908, %v915
  %v1006 = vunpack.c.l.s4 1983009808
  %v1007 = vunpack.c.0.s8 %v1006
  %v1008 = vlaneseq
  %v1009 = vshrl.u32 %v1008, 7
  %v1010 = vsub.s32 %v1007, %v1009
  %v1011 = vrot.slane %v1004, %v1010
  %v1012 = vcombine.low %v918, %v919
  %v1014 = vunpack.c.l.s4 1983009808
  %v1015 = vunpack.c.0.s8 %v1014
  %v1016 = vlaneseq
  %v1017 = vshrl.u32 %v1016, 7
  %v1018 = vsub.s32 %v1015, %v1017
  %v1019 = vrot.slane %v1012, %v1018
  %v1020 = vcombine.low %v995, %v1003
  %v1021 = vcombine.high %v995, %v1003
  %v1023 = vunpack.c.l.s4 1934713408
  %v1024 = vunpack.c.0.s8 %v1023
  %v1025 = vlaneseq
  %v1026 = vshrl.u32 %v1025, 7
  %v1027 = vsub.s32 %v1024, %v1026
  %v1028 = vrot.slane %v1020, %v1027
  %v1030 = vunpack.c.l.s4 1934713408
  %v1031 = vunpack.c.0.s8 %v1030
  %v1032 = vlaneseq
  %v1033 = vshrl.u32 %v1032, 7
  %v1034 = vsub.s32 %v1031, %v1033
  %v1035 = vrot.slane %v1021, %v1034
  %v1036 = vcombine.low %v1011, %v1019
  %v1037 = vcombine.high %v1011, %v1019
  %v1039 = vunpack.c.l.s4 1934713408
  %v1040 = vunpack.c.0.s8 %v1039
  %v1041 = vlaneseq
  %v1042 = vshrl.u32 %v1041, 7
  %v1043 = vsub.s32 %v1040, %v1042
  %v1044 = vrot.slane %v1036, %v1043
  %v1046 = vunpack.c.l.s4 1934713408
  %v1047 = vunpack.c.0.s8 %v1046
  %v1048 = vlaneseq
  %v1049 = vshrl.u32 %v1048, 7
  %v1050 = vsub.s32 %v1047, %v1049
  %v1051 = vrot.slane %v1037, %v1050
  %v1052 = vcombine.low %v1028, %v1044
  %v1053 = vcombine.high %v1028, %v1044
  %v1054 = vcombine.low %v1035, %v1051
  %v1055 = vcombine.high %v1035, %v1051
  %v1056 = vcombine.low %v960, %v967
  %v1058 = vunpack.c.l.s4 1983009808
  %v1059 = vunpack.c.0.s8 %v1058
  %v1060 = vlaneseq
  %v1061 = vshrl.u32 %v1060, 7
  %v1062 = vsub.s32 %v1059, %v1061
  %v1063 = vrot.slane %v1056, %v1062
  %v1064 = vcombine.low %v984, %v985
  %v1066 = vunpack.c.l.s4 1983009808
  %v1067 = vunpack.c.0.s8 %v1066
  %v1068 = vlaneseq
  %v1069 = vshrl.u32 %v1068, 7
  %v1070 = vsub.s32 %v1067, %v1069
  %v1071 = vrot.slane %v1064, %v1070
  %v1072 = vcombine.low %v976, %v983
  %v1074 = vunpack.c.l.s4 1983009808
  %v1075 = vunpack.c.0.s8 %v1074
  %v1076 = vlaneseq
  %v1077 = vshrl.u32 %v1076, 7
  %v1078 = vsub.s32 %v1075, %v1077
  %v1079 = vrot.slane %v1072, %v1078
  %v1080 = vcombine.low %v986, %v987
  %v1082 = vunpack.c.l.s4 1983009808
  %v1083 = vunpack.c.0.s8 %v1082
  %v1084 = vlaneseq
  %v1085 = vshrl.u32 %v1084, 7
  %v1086 = vsub.s32 %v1083, %v1085
  %v1087 = vrot.slane %v1080, %v1086
  %v1088 = vcombine.low %v1063, %v1071
  %v1089 = vcombine.high %v1063, %v1071
  %v1091 = vunpack.c.l.s4 1934713408
  %v1092 = vunpack.c.0.s8 %v1091
  %v1093 = vlaneseq
  %v1094 = vshrl.u32 %v1093, 7
  %v1095 = vsub.s32 %v1092, %v1094
  %v1096 = vrot.slane %v1088, %v1095
  %v1098 = vunpack.c.l.s4 1934713408
  %v1099 = vunpack.c.0.s8 %v1098
  %v1100 = vlaneseq
  %v1101 = vshrl.u32 %v1100, 7
  %v1102 = vsub.s32 %v1099, %v1101
  %v1103 = vrot.slane %v1089, %v1102
  %v1104 = vcombine.low %v1079, %v1087
  %v1105 = vcombine.high %v1079, %v1087
  %v1107 = vunpack.c.l.s4 1934713408
  %v1108 = vunpack.c.0.s8 %v1107
  %v1109 = vlaneseq
  %v1110 = vshrl.u32 %v1109, 7
  %v1111 = vsub.s32 %v1108, %v1110
  %v1112 = vrot.slane %v1104, %v1111
  %v1114 = vunpack.c.l.s4 1934713408
  %v1115 = vunpack.c.0.s8 %v1114
  %v1116 = vlaneseq
  %v1117 = vshrl.u32 %v1116, 7
  %v1118 = vsub.s32 %v1115, %v1117
  %v1119 = vrot.slane %v1105, %v1118
  %v1120 = vcombine.low %v1096, %v1112
  %v1121 = vcombine.high %v1096, %v1112
  %v1122 = vcombine.low %v1103, %v1119
  %v1123 = vcombine.high %v1103, %v1119
  %v1124 = vpack.c.bf16 %v1120, %v1052
  %v1125 = vpack.c.bf16 %v1121, %v1053
  %v1126 = vpack.c.bf16 %v1122, %v1054
  %v1127 = vpack.c.bf16 %v1123, %v1055
  %v1128 = vld [vmem:[%s2 + $0x10] sm:$0xff]
  %v1129 = vld [vmem:[%s2 + $0x28] sm:$0xff]
  %vm1130 = vcmask 130048
  %v1132 = vsel %vm1130, %v532, 0
  %v1135 = vsel %vm1130, %v828, 0
  %1137 = vmatprep.subr.bf16.mxu0 0
  %1138 = vmatpush1.bf16.xpose.msra.mxu0 0
  %1139 = vmatprep.subr.bf16.mxu0 0
  %1140 = vmatpush1.bf16.xpose.msra.mxu0 0
  %1141 = vmatprep.subr.bf16.mxu0 0
  %1142 = vmatpush1.bf16.xpose.msra.mxu0 0
  %1143 = vmatprep.subr.bf16.mxu0 0
  %1144 = vmatpush1.bf16.xpose.msra.mxu0 0
  %1145 = vmatprep.subr.bf16.mxu0 0
  %1146 = vmatpush1.bf16.xpose.msra.mxu0 0
  %1147 = vmatprep.subr.bf16.mxu0 0
  %1148 = vmatpush1.bf16.xpose.msra.mxu0 0
  %1149 = vmatprep.subr.bf16.mxu0 0
  %1150 = vmatpush1.bf16.xpose.msra.mxu0 0
  %1151 = vmatprep.subr.bf16.mxu0 0
  %1152 = vmatpush1.bf16.xpose.msra.mxu0 %v1135
  %1153 = vmatprep.subr.bf16.mxu0 0
  %1154 = vmatpush2.bf16.xpose.msra.mxu0 0
  %1155 = vmatprep.subr.bf16.mxu0 0
  %1156 = vmatpush2.bf16.xpose.msra.mxu0 0
  %1157 = vmatprep.subr.bf16.mxu0 0
  %1158 = vmatpush2.bf16.xpose.msra.mxu0 0
  %1159 = vmatprep.subr.bf16.mxu0 0
  %1160 = vmatpush2.bf16.xpose.msra.mxu0 0
  %1161 = vmatprep.subr.bf16.mxu0 0
  %1162 = vmatpush2.bf16.xpose.msra.mxu0 0
  %1163 = vmatprep.subr.bf16.mxu0 0
  %1164 = vmatpush2.bf16.xpose.msra.mxu0 0
  %1165 = vmatprep.subr.bf16.mxu0 0
  %1166 = vmatpush2.bf16.xpose.msra.mxu0 0
  %1167 = vmatprep.subr.bf16.mxu0 0
  %1168 = vmatpush2.bf16.xpose.msra.mxu0 0
  %1169 = vmatprep.mubr.bf16.mxu0 0
  %1170 = vmatmul.mubr.bf16.gmra.mxu0 %v1132
  %v1171 = vpop.f32.mrf.mxu0
  %v1172 = vadd.f32 %v1128, %v1171
  %v1173 = vpop.f32.mrf.mxu0
  %v1174 = vpop.f32.mrf.mxu0
  %v1175 = vadd.f32 %v1129, %v1174
  %v1176 = vpop.f32.mrf.mxu0
  %1177 = vdwg.mxu0
  %v1179 = vsel %vm1130, %v533, 0
  %v1182 = vsel %vm1130, %v829, 0
  %1184 = vmatprep.subr.bf16.mxu0 0
  %1185 = vmatpush1.bf16.xpose.msra.mxu0 0
  %1186 = vmatprep.subr.bf16.mxu0 0
  %1187 = vmatpush1.bf16.xpose.msra.mxu0 0
  %1188 = vmatprep.subr.bf16.mxu0 0
  %1189 = vmatpush1.bf16.xpose.msra.mxu0 0
  %1190 = vmatprep.subr.bf16.mxu0 0
  %1191 = vmatpush1.bf16.xpose.msra.mxu0 0
  %1192 = vmatprep.subr.bf16.mxu0 0
  %1193 = vmatpush1.bf16.xpose.msra.mxu0 0
  %1194 = vmatprep.subr.bf16.mxu0 0
  %1195 = vmatpush1.bf16.xpose.msra.mxu0 0
  %1196 = vmatprep.subr.bf16.mxu0 0
  %1197 = vmatpush1.bf16.xpose.msra.mxu0 0
  %1198 = vmatprep.subr.bf16.mxu0 0
  %1199 = vmatpush1.bf16.xpose.msra.mxu0 %v1182
  %1200 = vmatprep.subr.bf16.mxu0 0
  %1201 = vmatpush2.bf16.xpose.msra.mxu0 0
  %1202 = vmatprep.subr.bf16.mxu0 0
  %1203 = vmatpush2.bf16.xpose.msra.mxu0 0
  %1204 = vmatprep.subr.bf16.mxu0 0
  %1205 = vmatpush2.bf16.xpose.msra.mxu0 0
  %1206 = vmatprep.subr.bf16.mxu0 0
  %1207 = vmatpush2.bf16.xpose.msra.mxu0 0
  %1208 = vmatprep.subr.bf16.mxu0 0
  %1209 = vmatpush2.bf16.xpose.msra.mxu0 0
  %1210 = vmatprep.subr.bf16.mxu0 0
  %1211 = vmatpush2.bf16.xpose.msra.mxu0 0
  %1212 = vmatprep.subr.bf16.mxu0 0
  %1213 = vmatpush2.bf16.xpose.msra.mxu0 0
  %1214 = vmatprep.subr.bf16.mxu0 0
  %1215 = vmatpush2.bf16.xpose.msra.mxu0 0
  %1216 = vmatprep.mubr.bf16.mxu0 0
  %1217 = vmatmul.mubr.bf16.gmra.mxu0 %v1179
  %v1218 = vpop.f32.mrf.mxu0
  %v1219 = vadd.f32 %v1128, %v1218
  %v1220 = vpop.f32.mrf.mxu0
  %v1221 = vpop.f32.mrf.mxu0
  %v1222 = vadd.f32 %v1129, %v1221
  %v1223 = vpop.f32.mrf.mxu0
  %1224 = vdwg.mxu0
  %v1226 = vsel %vm1130, %v534, 0
  %v1229 = vsel %vm1130, %v830, 0
  %1231 = vmatprep.subr.bf16.mxu0 0
  %1232 = vmatpush1.bf16.xpose.msra.mxu0 0
  %1233 = vmatprep.subr.bf16.mxu0 0
  %1234 = vmatpush1.bf16.xpose.msra.mxu0 0
  %1235 = vmatprep.subr.bf16.mxu0 0
  %1236 = vmatpush1.bf16.xpose.msra.mxu0 0
  %1237 = vmatprep.subr.bf16.mxu0 0
  %1238 = vmatpush1.bf16.xpose.msra.mxu0 0
  %1239 = vmatprep.subr.bf16.mxu0 0
  %1240 = vmatpush1.bf16.xpose.msra.mxu0 0
  %1241 = vmatprep.subr.bf16.mxu0 0
  %1242 = vmatpush1.bf16.xpose.msra.mxu0 0
  %1243 = vmatprep.subr.bf16.mxu0 0
  %1244 = vmatpush1.bf16.xpose.msra.mxu0 0
  %1245 = vmatprep.subr.bf16.mxu0 0
  %1246 = vmatpush1.bf16.xpose.msra.mxu0 %v1229
  %1247 = vmatprep.subr.bf16.mxu0 0
  %1248 = vmatpush2.bf16.xpose.msra.mxu0 0
  %1249 = vmatprep.subr.bf16.mxu0 0
  %1250 = vmatpush2.bf16.xpose.msra.mxu0 0
  %1251 = vmatprep.subr.bf16.mxu0 0
  %1252 = vmatpush2.bf16.xpose.msra.mxu0 0
  %1253 = vmatprep.subr.bf16.mxu0 0
  %1254 = vmatpush2.bf16.xpose.msra.mxu0 0
  %1255 = vmatprep.subr.bf16.mxu0 0
  %1256 = vmatpush2.bf16.xpose.msra.mxu0 0
  %1257 = vmatprep.subr.bf16.mxu0 0
  %1258 = vmatpush2.bf16.xpose.msra.mxu0 0
  %1259 = vmatprep.subr.bf16.mxu0 0
  %1260 = vmatpush2.bf16.xpose.msra.mxu0 0
  %1261 = vmatprep.subr.bf16.mxu0 0
  %1262 = vmatpush2.bf16.xpose.msra.mxu0 0
  %1263 = vmatprep.mubr.bf16.mxu0 0
  %1264 = vmatmul.mubr.bf16.gmra.mxu0 %v1226
  %v1265 = vpop.f32.mrf.mxu0
  %v1266 = vadd.f32 %v1128, %v1265
  %v1267 = vpop.f32.mrf.mxu0
  %v1268 = vpop.f32.mrf.mxu0
  %v1269 = vadd.f32 %v1129, %v1268
  %v1270 = vpop.f32.mrf.mxu0
  %1271 = vdwg.mxu0
  %v1273 = vsel %vm1130, %v535, 0
  %v1276 = vsel %vm1130, %v831, 0
  %1278 = vmatprep.subr.bf16.mxu0 0
  %1279 = vmatpush1.bf16.xpose.msra.mxu0 0
  %1280 = vmatprep.subr.bf16.mxu0 0
  %1281 = vmatpush1.bf16.xpose.msra.mxu0 0
  %1282 = vmatprep.subr.bf16.mxu0 0
  %1283 = vmatpush1.bf16.xpose.msra.mxu0 0
  %1284 = vmatprep.subr.bf16.mxu0 0
  %1285 = vmatpush1.bf16.xpose.msra.mxu0 0
  %1286 = vmatprep.subr.bf16.mxu0 0
  %1287 = vmatpush1.bf16.xpose.msra.mxu0 0
  %1288 = vmatprep.subr.bf16.mxu0 0
  %1289 = vmatpush1.bf16.xpose.msra.mxu0 0
  %1290 = vmatprep.subr.bf16.mxu0 0
  %1291 = vmatpush1.bf16.xpose.msra.mxu0 0
  %1292 = vmatprep.subr.bf16.mxu0 0
  %1293 = vmatpush1.bf16.xpose.msra.mxu0 %v1276
  %1294 = vmatprep.subr.bf16.mxu0 0
  %1295 = vmatpush2.bf16.xpose.msra.mxu0 0
  %1296 = vmatprep.subr.bf16.mxu0 0
  %1297 = vmatpush2.bf16.xpose.msra.mxu0 0
  %1298 = vmatprep.subr.bf16.mxu0 0
  %1299 = vmatpush2.bf16.xpose.msra.mxu0 0
  %1300 = vmatprep.subr.bf16.mxu0 0
  %1301 = vmatpush2.bf16.xpose.msra.mxu0 0
  %1302 = vmatprep.subr.bf16.mxu0 0
  %1303 = vmatpush2.bf16.xpose.msra.mxu0 0
  %1304 = vmatprep.subr.bf16.mxu0 0
  %1305 = vmatpush2.bf16.xpose.msra.mxu0 0
  %1306 = vmatprep.subr.bf16.mxu0 0
  %1307 = vmatpush2.bf16.xpose.msra.mxu0 0
  %1308 = vmatprep.subr.bf16.mxu0 0
  %1309 = vmatpush2.bf16.xpose.msra.mxu0 0
  %1310 = vmatprep.mubr.bf16.mxu0 0
  %1311 = vmatmul.mubr.bf16.gmra.mxu0 %v1273
  %v1312 = vpop.f32.mrf.mxu0
  %v1313 = vadd.f32 %v1128, %v1312
  %v1314 = vpop.f32.mrf.mxu0
  %v1315 = vpop.f32.mrf.mxu0
  %v1316 = vadd.f32 %v1129, %v1315
  %v1317 = vpop.f32.mrf.mxu0
  %1318 = vdwg.mxu0
  %v1319 = vsel %vm1130, %v1172, -inf
  %1320 = vmax.xlane.f32.xlu0 %v1319
  %v1321 = vpop.xlane.xlu0 %1320
  %v1322 = vsel %vm1130, %v1175, -inf
  %1323 = vmax.xlane.f32.xlu0 %v1322
  %v1324 = vpop.xlane.xlu0 %1323
  %v1325 = vsel %vm1130, %v1219, -inf
  %1326 = vmax.xlane.f32.xlu0 %v1325
  %v1327 = vpop.xlane.xlu0 %1326
  %v1328 = vsel %vm1130, %v1222, -inf
  %1329 = vmax.xlane.f32.xlu0 %v1328
  %v1330 = vpop.xlane.xlu0 %1329
  %v1331 = vsel %vm1130, %v1266, -inf
  %1332 = vmax.xlane.f32.xlu0 %v1331
  %v1333 = vpop.xlane.xlu0 %1332
  %v1334 = vsel %vm1130, %v1269, -inf
  %1335 = vmax.xlane.f32.xlu0 %v1334
  %v1336 = vpop.xlane.xlu0 %1335
  %v1337 = vsel %vm1130, %v1313, -inf
  %1338 = vmax.xlane.f32.xlu0 %v1337
  %v1339 = vpop.xlane.xlu0 %1338
  %v1340 = vsel %vm1130, %v1316, -inf
  %1341 = vmax.xlane.f32.xlu0 %v1340
  %v1342 = vpop.xlane.xlu0 %1341
  %v1343 = vsub.f32 %v1172, %v1321
  %v1344 = vsub.f32 %v1175, %v1324
  %v1345 = vsub.f32 %v1219, %v1327
  %v1346 = vsub.f32 %v1222, %v1330
  %v1347 = vsub.f32 %v1266, %v1333
  %v1348 = vsub.f32 %v1269, %v1336
  %v1349 = vsub.f32 %v1313, %v1339
  %v1350 = vsub.f32 %v1316, %v1342
  %v1351 = vmul.f32 %v1343, 1.442695
  %v1352 = vpow.pop %v1351
  %v1353 = vmul.f32 %v1344, 1.442695
  %v1354 = vpow.pop %v1353
  %v1355 = vmul.f32 %v1345, 1.442695
  %v1356 = vpow.pop %v1355
  %v1357 = vmul.f32 %v1346, 1.442695
  %v1358 = vpow.pop %v1357
  %v1359 = vmul.f32 %v1347, 1.442695
  %v1360 = vpow.pop %v1359
  %v1361 = vmul.f32 %v1348, 1.442695
  %v1362 = vpow.pop %v1361
  %v1363 = vmul.f32 %v1349, 1.442695
  %v1364 = vpow.pop %v1363
  %v1365 = vmul.f32 %v1350, 1.442695
  %v1366 = vpow.pop %v1365
  %v1367 = vsel %vm1130, %v1352, 0.0
  %1368 = vadd.xlane.f32.xlu0 %v1367
  %v1369 = vpop.xlane.xlu0 %1368
  %v1370 = vsel %vm1130, %v1354, 0.0
  %1371 = vadd.xlane.f32.xlu0 %v1370
  %v1372 = vpop.xlane.xlu0 %1371
  %v1373 = vsel %vm1130, %v1356, 0.0
  %1374 = vadd.xlane.f32.xlu0 %v1373
  %v1375 = vpop.xlane.xlu0 %1374
  %v1376 = vsel %vm1130, %v1358, 0.0
  %1377 = vadd.xlane.f32.xlu0 %v1376
  %v1378 = vpop.xlane.xlu0 %1377
  %v1379 = vsel %vm1130, %v1360, 0.0
  %1380 = vadd.xlane.f32.xlu0 %v1379
  %v1381 = vpop.xlane.xlu0 %1380
  %v1382 = vsel %vm1130, %v1362, 0.0
  %1383 = vadd.xlane.f32.xlu0 %v1382
  %v1384 = vpop.xlane.xlu0 %1383
  %v1385 = vsel %vm1130, %v1364, 0.0
  %1386 = vadd.xlane.f32.xlu0 %v1385
  %v1387 = vpop.xlane.xlu0 %1386
  %v1388 = vsel %vm1130, %v1366, 0.0
  %1389 = vadd.xlane.f32.xlu0 %v1388
  %v1390 = vpop.xlane.xlu0 %1389
  %v1391 = vrcp.pop %v1369
  %v1392 = vrcp.pop %v1372
  %v1393 = vrcp.pop %v1375
  %v1394 = vrcp.pop %v1378
  %v1395 = vrcp.pop %v1381
  %v1396 = vrcp.pop %v1384
  %v1397 = vrcp.pop %v1387
  %v1398 = vrcp.pop %v1390
  %v1399 = vmul.f32 %v1352, %v1391
  %v1400 = vmul.f32 %v1354, %v1392
  %v1401 = vmul.f32 %v1356, %v1393
  %v1402 = vmul.f32 %v1358, %v1394
  %v1403 = vmul.f32 %v1360, %v1395
  %v1404 = vmul.f32 %v1362, %v1396
  %v1405 = vmul.f32 %v1364, %v1397
  %v1406 = vmul.f32 %v1366, %v1398
  %v1407 = vpack.c.bf16 %v1400, %v1399
  %v1408 = vpack.c.bf16 %v1402, %v1401
  %v1409 = vpack.c.bf16 %v1404, %v1403
  %v1410 = vpack.c.bf16 %v1406, %v1405
  %v1412 = vsel %vm1130, %v1407, 0
  %1414 = vmatprep.subr.bf16.mxu0 0
  %1415 = vmatpush1.bf16.msra.mxu0 0
  %1416 = vmatprep.subr.bf16.mxu0 0
  %1417 = vmatpush1.bf16.msra.mxu0 0
  %1418 = vmatprep.subr.bf16.mxu0 0
  %1419 = vmatpush1.bf16.msra.mxu0 0
  %1420 = vmatprep.subr.bf16.mxu0 0
  %1421 = vmatpush1.bf16.msra.mxu0 0
  %1422 = vmatprep.subr.bf16.mxu0 0
  %1423 = vmatpush1.bf16.msra.mxu0 0
  %1424 = vmatprep.subr.bf16.mxu0 0
  %1425 = vmatpush1.bf16.msra.mxu0 0
  %1426 = vmatprep.subr.bf16.mxu0 0
  %1427 = vmatpush1.bf16.msra.mxu0 0
  %1428 = vmatprep.subr.bf16.mxu0 0
  %1429 = vmatpush1.bf16.msra.mxu0 %v1124
  %1430 = vmatprep.subr.bf16.mxu0 0
  %1431 = vmatpush2.bf16.msra.mxu0 0
  %1432 = vmatprep.subr.bf16.mxu0 0
  %1433 = vmatpush2.bf16.msra.mxu0 0
  %1434 = vmatprep.subr.bf16.mxu0 0
  %1435 = vmatpush2.bf16.msra.mxu0 0
  %1436 = vmatprep.subr.bf16.mxu0 0
  %1437 = vmatpush2.bf16.msra.mxu0 0
  %1438 = vmatprep.subr.bf16.mxu0 0
  %1439 = vmatpush2.bf16.msra.mxu0 0
  %1440 = vmatprep.subr.bf16.mxu0 0
  %1441 = vmatpush2.bf16.msra.mxu0 0
  %1442 = vmatprep.subr.bf16.mxu0 0
  %1443 = vmatpush2.bf16.msra.mxu0 0
  %1444 = vmatprep.subr.bf16.mxu0 0
  %1445 = vmatpush2.bf16.msra.mxu0 0
  %1446 = vmatprep.mubr.bf16.mxu0 0
  %1447 = vmatmul.mubr.bf16.gmra.mxu0 %v1412
  %v1448 = vpop.f32.mrf.mxu0
  %v1449 = vadd.f32 0.0, %v1448
  %v1450 = vpop.f32.mrf.mxu0
  %v1451 = vpop.f32.mrf.mxu0
  %v1452 = vadd.f32 0.0, %v1451
  %v1453 = vpop.f32.mrf.mxu0
  %1454 = vdwg.mxu0
  %v1456 = vsel %vm1130, %v1408, 0
  %1458 = vmatprep.subr.bf16.mxu0 0
  %1459 = vmatpush1.bf16.msra.mxu0 0
  %1460 = vmatprep.subr.bf16.mxu0 0
  %1461 = vmatpush1.bf16.msra.mxu0 0
  %1462 = vmatprep.subr.bf16.mxu0 0
  %1463 = vmatpush1.bf16.msra.mxu0 0
  %1464 = vmatprep.subr.bf16.mxu0 0
  %1465 = vmatpush1.bf16.msra.mxu0 0
  %1466 = vmatprep.subr.bf16.mxu0 0
  %1467 = vmatpush1.bf16.msra.mxu0 0
  %1468 = vmatprep.subr.bf16.mxu0 0
  %1469 = vmatpush1.bf16.msra.mxu0 0
  %1470 = vmatprep.subr.bf16.mxu0 0
  %1471 = vmatpush1.bf16.msra.mxu0 0
  %1472 = vmatprep.subr.bf16.mxu0 0
  %1473 = vmatpush1.bf16.msra.mxu0 %v1125
  %1474 = vmatprep.subr.bf16.mxu0 0
  %1475 = vmatpush2.bf16.msra.mxu0 0
  %1476 = vmatprep.subr.bf16.mxu0 0
  %1477 = vmatpush2.bf16.msra.mxu0 0
  %1478 = vmatprep.subr.bf16.mxu0 0
  %1479 = vmatpush2.bf16.msra.mxu0 0
  %1480 = vmatprep.subr.bf16.mxu0 0
  %1481 = vmatpush2.bf16.msra.mxu0 0
  %1482 = vmatprep.subr.bf16.mxu0 0
  %1483 = vmatpush2.bf16.msra.mxu0 0
  %1484 = vmatprep.subr.bf16.mxu0 0
  %1485 = vmatpush2.bf16.msra.mxu0 0
  %1486 = vmatprep.subr.bf16.mxu0 0
  %1487 = vmatpush2.bf16.msra.mxu0 0
  %1488 = vmatprep.subr.bf16.mxu0 0
  %1489 = vmatpush2.bf16.msra.mxu0 0
  %1490 = vmatprep.mubr.bf16.mxu0 0
  %1491 = vmatmul.mubr.bf16.gmra.mxu0 %v1456
  %v1492 = vpop.f32.mrf.mxu0
  %v1493 = vadd.f32 0.0, %v1492
  %v1494 = vpop.f32.mrf.mxu0
  %v1495 = vpop.f32.mrf.mxu0
  %v1496 = vadd.f32 0.0, %v1495
  %v1497 = vpop.f32.mrf.mxu0
  %1498 = vdwg.mxu0
  %v1500 = vsel %vm1130, %v1409, 0
  %1502 = vmatprep.subr.bf16.mxu0 0
  %1503 = vmatpush1.bf16.msra.mxu0 0
  %1504 = vmatprep.subr.bf16.mxu0 0
  %1505 = vmatpush1.bf16.msra.mxu0 0
  %1506 = vmatprep.subr.bf16.mxu0 0
  %1507 = vmatpush1.bf16.msra.mxu0 0
  %1508 = vmatprep.subr.bf16.mxu0 0
  %1509 = vmatpush1.bf16.msra.mxu0 0
  %1510 = vmatprep.subr.bf16.mxu0 0
  %1511 = vmatpush1.bf16.msra.mxu0 0
  %1512 = vmatprep.subr.bf16.mxu0 0
  %1513 = vmatpush1.bf16.msra.mxu0 0
  %1514 = vmatprep.subr.bf16.mxu0 0
  %1515 = vmatpush1.bf16.msra.mxu0 0
  %1516 = vmatprep.subr.bf16.mxu0 0
  %1517 = vmatpush1.bf16.msra.mxu0 %v1126
  %1518 = vmatprep.subr.bf16.mxu0 0
  %1519 = vmatpush2.bf16.msra.mxu0 0
  %1520 = vmatprep.subr.bf16.mxu0 0
  %1521 = vmatpush2.bf16.msra.mxu0 0
  %1522 = vmatprep.subr.bf16.mxu0 0
  %1523 = vmatpush2.bf16.msra.mxu0 0
  %1524 = vmatprep.subr.bf16.mxu0 0
  %1525 = vmatpush2.bf16.msra.mxu0 0
  %1526 = vmatprep.subr.bf16.mxu0 0
  %1527 = vmatpush2.bf16.msra.mxu0 0
  %1528 = vmatprep.subr.bf16.mxu0 0
  %1529 = vmatpush2.bf16.msra.mxu0 0
  %1530 = vmatprep.subr.bf16.mxu0 0
  %1531 = vmatpush2.bf16.msra.mxu0 0
  %1532 = vmatprep.subr.bf16.mxu0 0
  %1533 = vmatpush2.bf16.msra.mxu0 0
  %1534 = vmatprep.mubr.bf16.mxu0 0
  %1535 = vmatmul.mubr.bf16.gmra.mxu0 %v1500
  %v1536 = vpop.f32.mrf.mxu0
  %v1537 = vadd.f32 0.0, %v1536
  %v1538 = vpop.f32.mrf.mxu0
  %v1539 = vpop.f32.mrf.mxu0
  %v1540 = vadd.f32 0.0, %v1539
  %v1541 = vpop.f32.mrf.mxu0
  %1542 = vdwg.mxu0
  %v1544 = vsel %vm1130, %v1410, 0
  %1546 = vmatprep.subr.bf16.mxu0 0
  %1547 = vmatpush1.bf16.msra.mxu0 0
  %1548 = vmatprep.subr.bf16.mxu0 0
  %1549 = vmatpush1.bf16.msra.mxu0 0
  %1550 = vmatprep.subr.bf16.mxu0 0
  %1551 = vmatpush1.bf16.msra.mxu0 0
  %1552 = vmatprep.subr.bf16.mxu0 0
  %1553 = vmatpush1.bf16.msra.mxu0 0
  %1554 = vmatprep.subr.bf16.mxu0 0
  %1555 = vmatpush1.bf16.msra.mxu0 0
  %1556 = vmatprep.subr.bf16.mxu0 0
  %1557 = vmatpush1.bf16.msra.mxu0 0
  %1558 = vmatprep.subr.bf16.mxu0 0
  %1559 = vmatpush1.bf16.msra.mxu0 0
  %1560 = vmatprep.subr.bf16.mxu0 0
  %1561 = vmatpush1.bf16.msra.mxu0 %v1127
  %1562 = vmatprep.subr.bf16.mxu0 0
  %1563 = vmatpush2.bf16.msra.mxu0 0
  %1564 = vmatprep.subr.bf16.mxu0 0
  %1565 = vmatpush2.bf16.msra.mxu0 0
  %1566 = vmatprep.subr.bf16.mxu0 0
  %1567 = vmatpush2.bf16.msra.mxu0 0
  %1568 = vmatprep.subr.bf16.mxu0 0
  %1569 = vmatpush2.bf16.msra.mxu0 0
  %1570 = vmatprep.subr.bf16.mxu0 0
  %1571 = vmatpush2.bf16.msra.mxu0 0
  %1572 = vmatprep.subr.bf16.mxu0 0
  %1573 = vmatpush2.bf16.msra.mxu0 0
  %1574 = vmatprep.subr.bf16.mxu0 0
  %1575 = vmatpush2.bf16.msra.mxu0 0
  %1576 = vmatprep.subr.bf16.mxu0 0
  %1577 = vmatpush2.bf16.msra.mxu0 0
  %1578 = vmatprep.mubr.bf16.mxu0 0
  %1579 = vmatmul.mubr.bf16.gmra.mxu0 %v1544
  %v1580 = vpop.f32.mrf.mxu0
  %v1581 = vadd.f32 0.0, %v1580
  %v1582 = vpop.f32.mrf.mxu0
  %v1583 = vpop.f32.mrf.mxu0
  %v1584 = vadd.f32 0.0, %v1583
  %v1585 = vpop.f32.mrf.mxu0
  %1586 = vdwg.mxu0
  %v1587 = vcombine.low %v1449, %v1537
  %v1588 = vcombine.high %v1449, %v1537
  %v1590 = vunpack.c.l.s4 1983009808
  %v1591 = vunpack.c.0.s8 %v1590
  %v1592 = vlaneseq
  %v1593 = vshrl.u32 %v1592, 7
  %v1594 = vsub.s32 %v1591, %v1593
  %v1595 = vrot.slane %v1587, %v1594
  %v1597 = vunpack.c.l.s4 1983009808
  %v1598 = vunpack.c.0.s8 %v1597
  %v1599 = vlaneseq
  %v1600 = vshrl.u32 %v1599, 7
  %v1601 = vsub.s32 %v1598, %v1600
  %v1602 = vrot.slane %v1588, %v1601
  %v1603 = vcombine.low %v1493, %v1581
  %v1604 = vcombine.high %v1493, %v1581
  %v1606 = vunpack.c.l.s4 1983009808
  %v1607 = vunpack.c.0.s8 %v1606
  %v1608 = vlaneseq
  %v1609 = vshrl.u32 %v1608, 7
  %v1610 = vsub.s32 %v1607, %v1609
  %v1611 = vrot.slane %v1603, %v1610
  %v1613 = vunpack.c.l.s4 1983009808
  %v1614 = vunpack.c.0.s8 %v1613
  %v1615 = vlaneseq
  %v1616 = vshrl.u32 %v1615, 7
  %v1617 = vsub.s32 %v1614, %v1616
  %v1618 = vrot.slane %v1604, %v1617
  %v1619 = vcombine.low %v1595, %v1611
  %v1620 = vcombine.high %v1595, %v1611
  %v1622 = vunpack.c.l.s4 1934713408
  %v1623 = vunpack.c.0.s8 %v1622
  %v1624 = vlaneseq
  %v1625 = vshrl.u32 %v1624, 7
  %v1626 = vsub.s32 %v1623, %v1625
  %v1627 = vrot.slane %v1619, %v1626
  %v1629 = vunpack.c.l.s4 1934713408
  %v1630 = vunpack.c.0.s8 %v1629
  %v1631 = vlaneseq
  %v1632 = vshrl.u32 %v1631, 7
  %v1633 = vsub.s32 %v1630, %v1632
  %v1634 = vrot.slane %v1620, %v1633
  %v1635 = vcombine.low %v1602, %v1618
  %v1636 = vcombine.high %v1602, %v1618
  %v1638 = vunpack.c.l.s4 1934713408
  %v1639 = vunpack.c.0.s8 %v1638
  %v1640 = vlaneseq
  %v1641 = vshrl.u32 %v1640, 7
  %v1642 = vsub.s32 %v1639, %v1641
  %v1643 = vrot.slane %v1635, %v1642
  %v1645 = vunpack.c.l.s4 1934713408
  %v1646 = vunpack.c.0.s8 %v1645
  %v1647 = vlaneseq
  %v1648 = vshrl.u32 %v1647, 7
  %v1649 = vsub.s32 %v1646, %v1648
  %v1650 = vrot.slane %v1636, %v1649
  %v1651 = vcombine.high %v1627, 0.0
  %v1652 = vcombine.high %v1634, 0.0
  %v1653 = vcombine.high %v1643, 0.0
  %v1654 = vcombine.high %v1650, 0.0
  %v1655 = vcombine.low %v1452, %v1540
  %v1656 = vcombine.high %v1452, %v1540
  %v1658 = vunpack.c.l.s4 1983009808
  %v1659 = vunpack.c.0.s8 %v1658
  %v1660 = vlaneseq
  %v1661 = vshrl.u32 %v1660, 7
  %v1662 = vsub.s32 %v1659, %v1661
  %v1663 = vrot.slane %v1655, %v1662
  %v1665 = vunpack.c.l.s4 1983009808
  %v1666 = vunpack.c.0.s8 %v1665
  %v1667 = vlaneseq
  %v1668 = vshrl.u32 %v1667, 7
  %v1669 = vsub.s32 %v1666, %v1668
  %v1670 = vrot.slane %v1656, %v1669
  %v1671 = vcombine.low %v1496, %v1584
  %v1672 = vcombine.high %v1496, %v1584
  %v1674 = vunpack.c.l.s4 1983009808
  %v1675 = vunpack.c.0.s8 %v1674
  %v1676 = vlaneseq
  %v1677 = vshrl.u32 %v1676, 7
  %v1678 = vsub.s32 %v1675, %v1677
  %v1679 = vrot.slane %v1671, %v1678
  %v1681 = vunpack.c.l.s4 1983009808
  %v1682 = vunpack.c.0.s8 %v1681
  %v1683 = vlaneseq
  %v1684 = vshrl.u32 %v1683, 7
  %v1685 = vsub.s32 %v1682, %v1684
  %v1686 = vrot.slane %v1672, %v1685
  %v1687 = vcombine.low %v1663, %v1679
  %v1688 = vcombine.high %v1663, %v1679
  %v1690 = vunpack.c.l.s4 1934713408
  %v1691 = vunpack.c.0.s8 %v1690
  %v1692 = vlaneseq
  %v1693 = vshrl.u32 %v1692, 7
  %v1694 = vsub.s32 %v1691, %v1693
  %v1695 = vrot.slane %v1687, %v1694
  %v1697 = vunpack.c.l.s4 1934713408
  %v1698 = vunpack.c.0.s8 %v1697
  %v1699 = vlaneseq
  %v1700 = vshrl.u32 %v1699, 7
  %v1701 = vsub.s32 %v1698, %v1700
  %v1702 = vrot.slane %v1688, %v1701
  %v1703 = vcombine.low %v1670, %v1686
  %v1704 = vcombine.high %v1670, %v1686
  %v1706 = vunpack.c.l.s4 1934713408
  %v1707 = vunpack.c.0.s8 %v1706
  %v1708 = vlaneseq
  %v1709 = vshrl.u32 %v1708, 7
  %v1710 = vsub.s32 %v1707, %v1709
  %v1711 = vrot.slane %v1703, %v1710
  %v1713 = vunpack.c.l.s4 1934713408
  %v1714 = vunpack.c.0.s8 %v1713
  %v1715 = vlaneseq
  %v1716 = vshrl.u32 %v1715, 7
  %v1717 = vsub.s32 %v1714, %v1716
  %v1718 = vrot.slane %v1704, %v1717
  %v1719 = vcombine.high %v1695, 0.0
  %v1720 = vcombine.high %v1702, 0.0
  %v1721 = vcombine.high %v1711, 0.0
  %v1722 = vcombine.high %v1718, 0.0
  %v1723 = vcombine.low %v1627, %v1634
  %v1725 = vunpack.c.l.s4 1983009808
  %v1726 = vunpack.c.0.s8 %v1725
  %v1727 = vlaneseq
  %v1728 = vshrl.u32 %v1727, 7
  %v1729 = vsub.s32 %v1726, %v1728
  %v1730 = vrot.slane %v1723, %v1729
  %v1731 = vcombine.low %v1651, %v1652
  %v1733 = vunpack.c.l.s4 1983009808
  %v1734 = vunpack.c.0.s8 %v1733
  %v1735 = vlaneseq
  %v1736 = vshrl.u32 %v1735, 7
  %v1737 = vsub.s32 %v1734, %v1736
  %v1738 = vrot.slane %v1731, %v1737
  %v1739 = vcombine.low %v1643, %v1650
  %v1741 = vunpack.c.l.s4 1983009808
  %v1742 = vunpack.c.0.s8 %v1741
  %v1743 = vlaneseq
  %v1744 = vshrl.u32 %v1743, 7
  %v1745 = vsub.s32 %v1742, %v1744
  %v1746 = vrot.slane %v1739, %v1745
  %v1747 = vcombine.low %v1653, %v1654
  %v1749 = vunpack.c.l.s4 1983009808
  %v1750 = vunpack.c.0.s8 %v1749
  %v1751 = vlaneseq
  %v1752 = vshrl.u32 %v1751, 7
  %v1753 = vsub.s32 %v1750, %v1752
  %v1754 = vrot.slane %v1747, %v1753
  %v1755 = vcombine.low %v1730, %v1738
  %v1756 = vcombine.high %v1730, %v1738
  %v1758 = vunpack.c.l.s4 1934713408
  %v1759 = vunpack.c.0.s8 %v1758
  %v1760 = vlaneseq
  %v1761 = vshrl.u32 %v1760, 7
  %v1762 = vsub.s32 %v1759, %v1761
  %v1763 = vrot.slane %v1755, %v1762
  %v1765 = vunpack.c.l.s4 1934713408
  %v1766 = vunpack.c.0.s8 %v1765
  %v1767 = vlaneseq
  %v1768 = vshrl.u32 %v1767, 7
  %v1769 = vsub.s32 %v1766, %v1768
  %v1770 = vrot.slane %v1756, %v1769
  %v1771 = vcombine.low %v1746, %v1754
  %v1772 = vcombine.high %v1746, %v1754
  %v1774 = vunpack.c.l.s4 1934713408
  %v1775 = vunpack.c.0.s8 %v1774
  %v1776 = vlaneseq
  %v1777 = vshrl.u32 %v1776, 7
  %v1778 = vsub.s32 %v1775, %v1777
  %v1779 = vrot.slane %v1771, %v1778
  %v1781 = vunpack.c.l.s4 1934713408
  %v1782 = vunpack.c.0.s8 %v1781
  %v1783 = vlaneseq
  %v1784 = vshrl.u32 %v1783, 7
  %v1785 = vsub.s32 %v1782, %v1784
  %v1786 = vrot.slane %v1772, %v1785
  %v1787 = vcombine.low %v1763, %v1779
  %v1788 = vcombine.high %v1763, %v1779
  %v1789 = vcombine.low %v1770, %v1786
  %v1790 = vcombine.high %v1770, %v1786
  %v1791 = vcombine.low %v1695, %v1702
  %v1793 = vunpack.c.l.s4 1983009808
  %v1794 = vunpack.c.0.s8 %v1793
  %v1795 = vlaneseq
  %v1796 = vshrl.u32 %v1795, 7
  %v1797 = vsub.s32 %v1794, %v1796
  %v1798 = vrot.slane %v1791, %v1797
  %v1799 = vcombine.low %v1719, %v1720
  %v1801 = vunpack.c.l.s4 1983009808
  %v1802 = vunpack.c.0.s8 %v1801
  %v1803 = vlaneseq
  %v1804 = vshrl.u32 %v1803, 7
  %v1805 = vsub.s32 %v1802, %v1804
  %v1806 = vrot.slane %v1799, %v1805
  %v1807 = vcombine.low %v1711, %v1718
  %v1809 = vunpack.c.l.s4 1983009808
  %v1810 = vunpack.c.0.s8 %v1809
  %v1811 = vlaneseq
  %v1812 = vshrl.u32 %v1811, 7
  %v1813 = vsub.s32 %v1810, %v1812
  %v1814 = vrot.slane %v1807, %v1813
  %v1815 = vcombine.low %v1721, %v1722
  %v1817 = vunpack.c.l.s4 1983009808
  %v1818 = vunpack.c.0.s8 %v1817
  %v1819 = vlaneseq
  %v1820 = vshrl.u32 %v1819, 7
  %v1821 = vsub.s32 %v1818, %v1820
  %v1822 = vrot.slane %v1815, %v1821
  %v1823 = vcombine.low %v1798, %v1806
  %v1824 = vcombine.high %v1798, %v1806
  %v1826 = vunpack.c.l.s4 1934713408
  %v1827 = vunpack.c.0.s8 %v1826
  %v1828 = vlaneseq
  %v1829 = vshrl.u32 %v1828, 7
  %v1830 = vsub.s32 %v1827, %v1829
  %v1831 = vrot.slane %v1823, %v1830
  %v1833 = vunpack.c.l.s4 1934713408
  %v1834 = vunpack.c.0.s8 %v1833
  %v1835 = vlaneseq
  %v1836 = vshrl.u32 %v1835, 7
  %v1837 = vsub.s32 %v1834, %v1836
  %v1838 = vrot.slane %v1824, %v1837
  %v1839 = vcombine.low %v1814, %v1822
  %v1840 = vcombine.high %v1814, %v1822
  %v1842 = vunpack.c.l.s4 1934713408
  %v1843 = vunpack.c.0.s8 %v1842
  %v1844 = vlaneseq
  %v1845 = vshrl.u32 %v1844, 7
  %v1846 = vsub.s32 %v1843, %v1845
  %v1847 = vrot.slane %v1839, %v1846
  %v1849 = vunpack.c.l.s4 1934713408
  %v1850 = vunpack.c.0.s8 %v1849
  %v1851 = vlaneseq
  %v1852 = vshrl.u32 %v1851, 7
  %v1853 = vsub.s32 %v1850, %v1852
  %v1854 = vrot.slane %v1840, %v1853
  %v1855 = vcombine.low %v1831, %v1847
  %v1856 = vcombine.high %v1831, %v1847
  %v1857 = vcombine.low %v1838, %v1854
  %v1858 = vcombine.high %v1838, %v1854
  %1861 = vrot.lane.b32.xlu0 %v1788, 16
  %v1862 = vpop.permute.xlu0 %1861
  %1863 = vrot.lane.b32.xlu0 %v1856, 16
  %v1864 = vpop.permute.xlu0 %1863
  %1869 = vrot.lane.b32.xlu0 %v1789, 32
  %v1870 = vpop.permute.xlu0 %1869
  %1871 = vrot.lane.b32.xlu0 %v1857, 32
  %v1872 = vpop.permute.xlu0 %1871
  %1877 = vrot.lane.b32.xlu0 %v1790, 48
  %v1878 = vpop.permute.xlu0 %1877
  %1879 = vrot.lane.b32.xlu0 %v1858, 48
  %v1880 = vpop.permute.xlu0 %1879
  %v1883 = vsel %vm1130, %v1787, %v1862
  %v1884 = vsel %vm1130, %v1855, %v1864
  %vm1885 = vcmask 261120
  %v1886 = vsel %vm1885, %v1883, %v1870
  %v1887 = vsel %vm1885, %v1884, %v1872
  %vm1888 = vcmask 392192
  %v1889 = vsel %vm1888, %v1886, %v1878
  %v1890 = vsel %vm1888, %v1887, %v1880
  %v1891 = vpack.c.bf16 %v1890, %v1889
  %v1892 = vld [vmem:[%s3] sm:$0xf]
  %v1893 = vld [vmem:[%s3 + $0x4] sm:$0xf]
  %v1894 = vld [vmem:[%s3 + $0x8] sm:$0xf]
  %v1895 = vld [vmem:[%s3 + $0xc] sm:$0xf]
  %v1896 = vld [vmem:[%s3 + $0x10] sm:$0xf]
  %v1897 = vld [vmem:[%s3 + $0x14] sm:$0xf]
  %v1898 = vld [vmem:[%s3 + $0x18] sm:$0xf]
  %v1899 = vld [vmem:[%s3 + $0x1c] sm:$0xf]
  %v1908 = vunpack.c.l.b16 %v1892
  %v1909 = vunpack.c.l.b16 %v1893
  %v1910 = vunpack.c.l.b16 %v1894
  %v1911 = vunpack.c.l.b16 %v1895
  %v1912 = vunpack.c.l.b16 %v1896
  %v1913 = vunpack.c.l.b16 %v1897
  %v1914 = vunpack.c.l.b16 %v1898
  %v1915 = vunpack.c.l.b16 %v1899
  %v1916 = vpack.c.b16 %v1909, %v1908
  %v1917 = vpack.c.b16 %v1911, %v1910
  %v1918 = vpack.c.b16 %v1913, %v1912
  %v1919 = vpack.c.b16 %v1915, %v1914
  %v1925 = vsel %vm28, %v1891, 0
  %1927 = vmatprep.subr.bf16.mxu0 0
  %1928 = vmatpush1.bf16.msra.mxu0 0
  %1929 = vmatprep.subr.bf16.mxu0 0
  %1930 = vmatpush1.bf16.msra.mxu0 0
  %1931 = vmatprep.subr.bf16.mxu0 0
  %1932 = vmatpush1.bf16.msra.mxu0 0
  %1933 = vmatprep.subr.bf16.mxu0 0
  %1934 = vmatpush1.bf16.msra.mxu0 0
  %1935 = vmatprep.subr.bf16.mxu0 0
  %1936 = vmatpush1.bf16.msra.mxu0 %v1919
  %1937 = vmatprep.subr.bf16.mxu0 0
  %1938 = vmatpush1.bf16.msra.mxu0 %v1918
  %1939 = vmatprep.subr.bf16.mxu0 0
  %1940 = vmatpush1.bf16.msra.mxu0 %v1917
  %1941 = vmatprep.subr.bf16.mxu0 0
  %1942 = vmatpush1.bf16.msra.mxu0 %v1916
  %1943 = vmatprep.subr.bf16.mxu0 0
  %1944 = vmatpush2.bf16.msra.mxu0 0
  %1945 = vmatprep.subr.bf16.mxu0 0
  %1946 = vmatpush2.bf16.msra.mxu0 0
  %1947 = vmatprep.subr.bf16.mxu0 0
  %1948 = vmatpush2.bf16.msra.mxu0 0
  %1949 = vmatprep.subr.bf16.mxu0 0
  %1950 = vmatpush2.bf16.msra.mxu0 0
  %1951 = vmatprep.subr.bf16.mxu0 0
  %1952 = vmatpush2.bf16.msra.mxu0 0
  %1953 = vmatprep.subr.bf16.mxu0 0
  %1954 = vmatpush2.bf16.msra.mxu0 0
  %1955 = vmatprep.subr.bf16.mxu0 0
  %1956 = vmatpush2.bf16.msra.mxu0 0
  %1957 = vmatprep.subr.bf16.mxu0 0
  %1958 = vmatpush2.bf16.msra.mxu0 0
  %1959 = vmatprep.mubr.bf16.mxu0 0
  %1960 = vmatmul.mubr.bf16.gmra.mxu0 %v1925
  %v1961 = vpop.f32.mrf.mxu0
  %v1962 = vadd.f32 0.0, %v1961
  %v1963 = vpop.f32.mrf.mxu0
  %v1964 = vpop.f32.mrf.mxu0
  %v1965 = vadd.f32 0.0, %v1964
  %v1966 = vpop.f32.mrf.mxu0
  %1967 = vdwg.mxu0
  %v1968 = vadd.f32 %v24, %v1962
  %v1969 = vadd.f32 %v25, %v1965
  %v1970 = vmul.f32 %v1968, %v1968
  %v1971 = vmul.f32 %v1969, %v1969
  %v1972 = vsel %vm28, %v1970, 0.0
  %1973 = vadd.xlane.f32.xlu0 %v1972
  %v1974 = vpop.xlane.xlu0 %1973
  %v1975 = vsel %vm28, %v1971, 0.0
  %1976 = vadd.xlane.f32.xlu0 %v1975
  %v1977 = vpop.xlane.xlu0 %1976
  %v1978 = vmul.f32 %v1974, %v35
  %v1979 = vmul.f32 %v1977, %v35
  %v1980 = vadd.f32 %v1978, 1e-05
  %v1981 = vadd.f32 %v1979, 1e-05
  %v1982 = vrsqrt.pop %v1980
  %v1983 = vrsqrt.pop %v1981
  %v1984 = vmul.f32 %v1968, %v1982
  %v1985 = vmul.f32 %v1969, %v1983
  %v1986 = vpack.c.bf16 %v1985, %v1984
  %v1987 = vld [vmem:[%s4] sm:$0xff]
  %v1988 = vld [vmem:[%s4 + $0x8] sm:$0xf]
  %v1989 = vld [vmem:[%s4 + $0xc] sm:$0xff]
  %v1990 = vld [vmem:[%s4 + $0x14] sm:$0xf]
  %v1991 = vld [vmem:[%s4 + $0x18] sm:$0xff]
  %v1992 = vld [vmem:[%s4 + $0x20] sm:$0xf]
  %v1993 = vld [vmem:[%s4 + $0x24] sm:$0xff]
  %v1994 = vld [vmem:[%s4 + $0x2c] sm:$0xf]
  %v1995 = vld [vmem:[%s4 + $0x30] sm:$0xff]
  %v1996 = vld [vmem:[%s4 + $0x38] sm:$0xf]
  %v1997 = vld [vmem:[%s4 + $0x3c] sm:$0xff]
  %v1998 = vld [vmem:[%s4 + $0x44] sm:$0xf]
  %v1999 = vld [vmem:[%s4 + $0x48] sm:$0xff]
  %v2000 = vld [vmem:[%s4 + $0x50] sm:$0xf]
  %v2001 = vld [vmem:[%s4 + $0x54] sm:$0xff]
  %v2002 = vld [vmem:[%s4 + $0x5c] sm:$0xf]
  %v2019 = vunpack.c.l.b16 %v1987
  %v2020 = vunpack.c.h.b16 %v1987
  %v2021 = vunpack.c.l.b16 %v1988
  %v2022 = vunpack.c.l.b16 %v1989
  %v2023 = vunpack.c.h.b16 %v1989
  %v2024 = vunpack.c.l.b16 %v1990
  %v2025 = vunpack.c.l.b16 %v1991
  %v2026 = vunpack.c.h.b16 %v1991
  %v2027 = vunpack.c.l.b16 %v1992
  %v2028 = vunpack.c.l.b16 %v1993
  %v2029 = vunpack.c.h.b16 %v1993
  %v2030 = vunpack.c.l.b16 %v1994
  %v2031 = vunpack.c.l.b16 %v1995
  %v2032 = vunpack.c.h.b16 %v1995
  %v2033 = vunpack.c.l.b16 %v1996
  %v2034 = vunpack.c.l.b16 %v1997
  %v2035 = vunpack.c.h.b16 %v1997
  %v2036 = vunpack.c.l.b16 %v1998
  %v2037 = vunpack.c.l.b16 %v1999
  %v2038 = vunpack.c.h.b16 %v1999
  %v2039 = vunpack.c.l.b16 %v2000
  %v2040 = vunpack.c.l.b16 %v2001
  %v2041 = vunpack.c.h.b16 %v2001
  %v2042 = vunpack.c.l.b16 %v2002
  %v2043 = vpack.c.b16 %v2022, %v2019
  %v2044 = vpack.c.b16 %v2023, %v2020
  %v2045 = vpack.c.b16 %v2024, %v2021
  %v2046 = vpack.c.b16 %v2028, %v2025
  %v2047 = vpack.c.b16 %v2029, %v2026
  %v2048 = vpack.c.b16 %v2030, %v2027
  %v2049 = vpack.c.b16 %v2034, %v2031
  %v2050 = vpack.c.b16 %v2035, %v2032
  %v2051 = vpack.c.b16 %v2036, %v2033
  %v2052 = vpack.c.b16 %v2040, %v2037
  %v2053 = vpack.c.b16 %v2041, %v2038
  %v2054 = vpack.c.b16 %v2042, %v2039
  %v2068 = vsel %vm28, %v1986, 0
  %2070 = vmatprep.subr.bf16.mxu0 0
  %2071 = vmatpush1.bf16.msra.mxu0 0
  %2072 = vmatprep.subr.bf16.mxu0 0
  %2073 = vmatpush1.bf16.msra.mxu0 0
  %2074 = vmatprep.subr.bf16.mxu0 0
  %2075 = vmatpush1.bf16.msra.mxu0 0
  %2076 = vmatprep.subr.bf16.mxu0 0
  %2077 = vmatpush1.bf16.msra.mxu0 0
  %2078 = vmatprep.subr.bf16.mxu0 %v2053
  %2079 = vmatpush1.bf16.msra.mxu0 %v2052
  %2080 = vmatprep.subr.bf16.mxu0 %v2050
  %2081 = vmatpush1.bf16.msra.mxu0 %v2049
  %2082 = vmatprep.subr.bf16.mxu0 %v2047
  %2083 = vmatpush1.bf16.msra.mxu0 %v2046
  %2084 = vmatprep.subr.bf16.mxu0 %v2044
  %2085 = vmatpush1.bf16.msra.mxu0 %v2043
  %2086 = vmatprep.subr.bf16.mxu0 0
  %2087 = vmatpush2.bf16.msra.mxu0 0
  %2088 = vmatprep.subr.bf16.mxu0 0
  %2089 = vmatpush2.bf16.msra.mxu0 0
  %2090 = vmatprep.subr.bf16.mxu0 0
  %2091 = vmatpush2.bf16.msra.mxu0 0
  %2092 = vmatprep.subr.bf16.mxu0 0
  %2093 = vmatpush2.bf16.msra.mxu0 0
  %2094 = vmatprep.subr.bf16.mxu0 0
  %2095 = vmatpush2.bf16.msra.mxu0 0
  %2096 = vmatprep.subr.bf16.mxu0 0
  %2097 = vmatpush2.bf16.msra.mxu0 0
  %2098 = vmatprep.subr.bf16.mxu0 0
  %2099 = vmatpush2.bf16.msra.mxu0 0
  %2100 = vmatprep.subr.bf16.mxu0 0
  %2101 = vmatpush2.bf16.msra.mxu0 0
  %2102 = vmatprep.mubr.bf16.mxu0 0
  %2103 = vmatmul.mubr.bf16.gmra.mxu0 %v2068
  %v2104 = vpop.f32.mrf.mxu0
  %v2105 = vadd.f32 0.0, %v2104
  %v2106 = vpop.f32.mrf.mxu0
  %v2107 = vadd.f32 0.0, %v2106
  %v2108 = vpop.f32.mrf.mxu0
  %v2109 = vadd.f32 0.0, %v2108
  %v2110 = vpop.f32.mrf.mxu0
  %v2111 = vadd.f32 0.0, %v2110
  %2112 = vdwg.mxu0
  %2113 = vmatprep.subr.bf16.mxu0 0
  %2114 = vmatpush1.bf16.msra.mxu0 0
  %2115 = vmatprep.subr.bf16.mxu0 0
  %2116 = vmatpush1.bf16.msra.mxu0 0
  %2117 = vmatprep.subr.bf16.mxu0 0
  %2118 = vmatpush1.bf16.msra.mxu0 0
  %2119 = vmatprep.subr.bf16.mxu0 0
  %2120 = vmatpush1.bf16.msra.mxu0 0
  %2121 = vmatprep.subr.bf16.mxu0 0
  %2122 = vmatpush1.bf16.msra.mxu0 %v2054
  %2123 = vmatprep.subr.bf16.mxu0 0
  %2124 = vmatpush1.bf16.msra.mxu0 %v2051
  %2125 = vmatprep.subr.bf16.mxu0 0
  %2126 = vmatpush1.bf16.msra.mxu0 %v2048
  %2127 = vmatprep.subr.bf16.mxu0 0
  %2128 = vmatpush1.bf16.msra.mxu0 %v2045
  %2129 = vmatprep.subr.bf16.mxu0 0
  %2130 = vmatpush2.bf16.msra.mxu0 0
  %2131 = vmatprep.subr.bf16.mxu0 0
  %2132 = vmatpush2.bf16.msra.mxu0 0
  %2133 = vmatprep.subr.bf16.mxu0 0
  %2134 = vmatpush2.bf16.msra.mxu0 0
  %2135 = vmatprep.subr.bf16.mxu0 0
  %2136 = vmatpush2.bf16.msra.mxu0 0
  %2137 = vmatprep.subr.bf16.mxu0 0
  %2138 = vmatpush2.bf16.msra.mxu0 0
  %2139 = vmatprep.subr.bf16.mxu0 0
  %2140 = vmatpush2.bf16.msra.mxu0 0
  %2141 = vmatprep.subr.bf16.mxu0 0
  %2142 = vmatpush2.bf16.msra.mxu0 0
  %2143 = vmatprep.subr.bf16.mxu0 0
  %2144 = vmatpush2.bf16.msra.mxu0 0
  %2145 = vmatprep.mubr.bf16.mxu0 0
  %2146 = vmatmul.mubr.bf16.gmra.mxu0 %v2068
  %v2147 = vpop.f32.mrf.mxu0
  %v2148 = vadd.f32 0.0, %v2147
  %v2149 = vpop.f32.mrf.mxu0
  %v2150 = vpop.f32.mrf.mxu0
  %v2151 = vadd.f32 0.0, %v2150
  %v2152 = vpop.f32.mrf.mxu0
  %2153 = vdwg.mxu0
  %v2154 = vsub.f32 0.0, %v2105
  %v2155 = vsub.f32 0.0, %v2107
  %v2156 = vsub.f32 0.0, %v2109
  %v2157 = vsub.f32 0.0, %v2111
  %v2158 = vmul.f32 %v2154, 1.442695
  %v2159 = vpow.pop %v2158
  %v2160 = vmul.f32 %v2155, 1.442695
  %v2161 = vpow.pop %v2160
  %v2162 = vmul.f32 %v2156, 1.442695
  %v2163 = vpow.pop %v2162
  %v2164 = vmul.f32 %v2157, 1.442695
  %v2165 = vpow.pop %v2164
  %v2166 = vadd.f32 %v2159, 1.0
  %v2167 = vadd.f32 %v2161, 1.0
  %v2168 = vadd.f32 %v2163, 1.0
  %v2169 = vadd.f32 %v2165, 1.0
  %v2170 = vrcp.pop %v2166
  %v2171 = vrcp.pop %v2167
  %v2172 = vrcp.pop %v2168
  %v2173 = vrcp.pop %v2169
  %v2174 = vmul.f32 %v2105, %v2170
  %v2175 = vmul.f32 %v2107, %v2171
  %v2176 = vmul.f32 %v2109, %v2172
  %v2177 = vmul.f32 %v2111, %v2173
  %2182 = vrot.lane.b32.xlu0 %v2107, 64
  %v2183 = vpop.permute.xlu0 %2182
  %2184 = vrot.lane.b32.xlu0 %v2148, 64
  %v2185 = vpop.permute.xlu0 %2184
  %2186 = vrot.lane.b32.xlu0 %v2111, 64
  %v2187 = vpop.permute.xlu0 %2186
  %2188 = vrot.lane.b32.xlu0 %v2151, 64
  %v2189 = vpop.permute.xlu0 %2188
  %v2190 = vsel %vm28, %v2183, %v2185
  %v2191 = vsel %vm28, %v2187, %v2189
  %v2196 = vmul.f32 %v2174, %v2190
  %v2197 = vmul.f32 %v2175, %v2185
  %v2198 = vmul.f32 %v2176, %v2191
  %v2199 = vmul.f32 %v2177, %v2189
  %v2200 = vpack.c.bf16 %v2198, %v2196
  %v2201 = vpack.c.bf16 %v2199, %v2197
  %v2202 = vld [vmem:[%s5] sm:$0xf]
  %v2203 = vld [vmem:[%s5 + $0x4] sm:$0xf]
  %v2204 = vld [vmem:[%s5 + $0x8] sm:$0xf]
  %v2205 = vld [vmem:[%s5 + $0xc] sm:$0xf]
  %v2206 = vld [vmem:[%s5 + $0x10] sm:$0xf]
  %v2207 = vld [vmem:[%s5 + $0x14] sm:$0xf]
  %v2208 = vld [vmem:[%s5 + $0x18] sm:$0xf]
  %v2209 = vld [vmem:[%s5 + $0x1c] sm:$0xf]
  %v2210 = vld [vmem:[%s5 + $0x20] sm:$0xf]
  %v2211 = vld [vmem:[%s5 + $0x24] sm:$0xf]
  %v2212 = vld [vmem:[%s5 + $0x28] sm:$0xf]
  %v2213 = vld [vmem:[%s5 + $0x2c] sm:$0xf]
  %v2214 = vld [vmem:[%s5 + $0x30] sm:$0xf]
  %v2215 = vld [vmem:[%s5 + $0x34] sm:$0xf]
  %v2216 = vld [vmem:[%s5 + $0x38] sm:$0xf]
  %v2217 = vld [vmem:[%s5 + $0x3c] sm:$0xf]
  %v2218 = vld [vmem:[%s5 + $0x40] sm:$0xf]
  %v2219 = vld [vmem:[%s5 + $0x44] sm:$0xf]
  %v2220 = vld [vmem:[%s5 + $0x48] sm:$0xf]
  %v2221 = vld [vmem:[%s5 + $0x4c] sm:$0xf]
  %v2222 = vld [vmem:[%s5 + $0x50] sm:$0xf]
  %v2223 = vld [vmem:[%s5 + $0x54] sm:$0xf]
  %v2224 = vld [vmem:[%s5 + $0x58] sm:$0xf]
  %v2225 = vld [vmem:[%s5 + $0x5c] sm:$0xf]
  %v2250 = vunpack.c.l.b16 %v2202
  %v2251 = vunpack.c.l.b16 %v2203
  %v2252 = vunpack.c.l.b16 %v2204
  %v2253 = vunpack.c.l.b16 %v2205
  %v2254 = vunpack.c.l.b16 %v2206
  %v2255 = vunpack.c.l.b16 %v2207
  %v2256 = vunpack.c.l.b16 %v2208
  %v2257 = vunpack.c.l.b16 %v2209
  %v2258 = vunpack.c.l.b16 %v2210
  %v2259 = vunpack.c.l.b16 %v2211
  %v2260 = vunpack.c.l.b16 %v2212
  %v2261 = vunpack.c.l.b16 %v2213
  %v2262 = vunpack.c.l.b16 %v2214
  %v2263 = vunpack.c.l.b16 %v2215
  %v2264 = vunpack.c.l.b16 %v2216
  %v2265 = vunpack.c.l.b16 %v2217
  %v2266 = vunpack.c.l.b16 %v2218
  %v2267 = vunpack.c.l.b16 %v2219
  %v2268 = vunpack.c.l.b16 %v2220
  %v2269 = vunpack.c.l.b16 %v2221
  %v2270 = vunpack.c.l.b16 %v2222
  %v2271 = vunpack.c.l.b16 %v2223
  %v2272 = vunpack.c.l.b16 %v2224
  %v2273 = vunpack.c.l.b16 %v2225
  %v2274 = vpack.c.b16 %v2251, %v2250
  %v2275 = vpack.c.b16 %v2253, %v2252
  %v2276 = vpack.c.b16 %v2255, %v2254
  %v2277 = vpack.c.b16 %v2257, %v2256
  %v2278 = vpack.c.b16 %v2259, %v2258
  %v2279 = vpack.c.b16 %v2261, %v2260
  %v2280 = vpack.c.b16 %v2263, %v2262
  %v2281 = vpack.c.b16 %v2265, %v2264
  %v2282 = vpack.c.b16 %v2267, %v2266
  %v2283 = vpack.c.b16 %v2269, %v2268
  %v2284 = vpack.c.b16 %v2271, %v2270
  %v2285 = vpack.c.b16 %v2273, %v2272
  %v2299 = vsel %vm28, %v2201, 0
  %2301 = vmatprep.subr.bf16.mxu0 0
  %2302 = vmatpush1.bf16.msra.mxu0 %v2281
  %2303 = vmatprep.subr.bf16.mxu0 0
  %2304 = vmatpush1.bf16.msra.mxu0 %v2280
  %2305 = vmatprep.subr.bf16.mxu0 0
  %2306 = vmatpush1.bf16.msra.mxu0 %v2279
  %2307 = vmatprep.subr.bf16.mxu0 0
  %2308 = vmatpush1.bf16.msra.mxu0 %v2278
  %2309 = vmatprep.subr.bf16.mxu0 0
  %2310 = vmatpush1.bf16.msra.mxu0 %v2277
  %2311 = vmatprep.subr.bf16.mxu0 0
  %2312 = vmatpush1.bf16.msra.mxu0 %v2276
  %2313 = vmatprep.subr.bf16.mxu0 0
  %2314 = vmatpush1.bf16.msra.mxu0 %v2275
  %2315 = vmatprep.subr.bf16.mxu0 0
  %2316 = vmatpush1.bf16.msra.mxu0 %v2274
  %2317 = vmatprep.subr.bf16.mxu0 0
  %2318 = vmatpush2.bf16.msra.mxu0 0
  %2319 = vmatprep.subr.bf16.mxu0 0
  %2320 = vmatpush2.bf16.msra.mxu0 0
  %2321 = vmatprep.subr.bf16.mxu0 0
  %2322 = vmatpush2.bf16.msra.mxu0 0
  %2323 = vmatprep.subr.bf16.mxu0 0
  %2324 = vmatpush2.bf16.msra.mxu0 0
  %2325 = vmatprep.subr.bf16.mxu0 0
  %2326 = vmatpush2.bf16.msra.mxu0 %v2285
  %2327 = vmatprep.subr.bf16.mxu0 0
  %2328 = vmatpush2.bf16.msra.mxu0 %v2284
  %2329 = vmatprep.subr.bf16.mxu0 0
  %2330 = vmatpush2.bf16.msra.mxu0 %v2283
  %2331 = vmatprep.subr.bf16.mxu0 0
  %2332 = vmatpush2.bf16.msra.mxu0 %v2282
  %2333 = vmatprep.mubr.bf16.mxu0 %v2299
  %2334 = vmatmul.mubr.bf16.gmra.mxu0 %v2200
  %v2335 = vpop.f32.mrf.mxu0
  %v2336 = vadd.f32 0.0, %v2335
  %v2337 = vpop.f32.mrf.mxu0
  %v2338 = vpop.f32.mrf.mxu0
  %v2339 = vadd.f32 0.0, %v2338
  %v2340 = vpop.f32.mrf.mxu0
  %2341 = vdwg.mxu0
  %v2342 = vadd.f32 %v1968, %v2336
  %v2343 = vadd.f32 %v1969, %v2339
  %2344 = vst.msk [vmem:[%s6] sm:$0xff] %vm28, %v2342
  %2345 = vst.msk [vmem:[%s6 + $0x8] sm:$0xff] %vm28, %v2343
  // Predicated region
  $region26: #{transformer_block.1} parent=0 // pred_check
    _
  $region27: #{transformer_block.1} parent=0 // pred_check_branch
    %2347 = sbr.rel (0) target = $region29
  $region28: #{transformer_block.1} parent=0 // pred_region
    _
  $region29: #{transformer_block.1} parent=0 // pred_fallthru
    _
  // Predicated region
  $region30: #{transformer_block.1} parent=0 // pred_check
    _
  $region31: #{transformer_block.1} parent=0 // pred_check_branch
    %2349 = sbr.rel (0) target = $region33
  $region32: #{transformer_block.1} parent=0 // pred_region
    _
  $region33: #{transformer_block.1} parent=0 // pred_fallthru
    _

</llo_original>
